<compile_context>
chip_gen: v7x
topology: tpu7x:2x2x1
jax: 0.10.0
libtpu: 0.0.40
codegen_flags: <defaults>
</compile_context>

<pallas_src>
import jax
import jax.numpy as jnp
import numpy as np
from jax.experimental import pallas as pl
from jax.experimental.pallas import tpu as pltpu

EPS = 1e-5


def resblock_kernel(x_ref, w1_ref, w2_hbm, t1_ref, t2_ref, out_ref,
                    pad_ref, w2_buf, w2_sem):
    """Whole (small) ResBlock in one kernel invocation.

    x_ref   : (N, H, W*C)    f32 input, NHWC with W and C merged (lane-dense)
    w1_ref  : (3, W*C, W*C)  block-tridiag conv1 weights (BN1 scale folded in)
    w2_hbm  : (3, W*C, W*C)  conv2 weights left in HBM (pl.ANY); DMA'd manually
    t*_ref  : (1, W*C)       f32 folded BN shift (+ conv bias), tiled W times
    out_ref : (N*H, W*C)     f32 output (lane-dense)
    pad_ref : (N, H+2, W*C)  scratch: row-padded activations (halo rows = 0)
    w2_buf  : (3, W*C, W*C)  VMEM landing buffer for the w2 DMA
    w2_sem  : DMA semaphore for the w2 copy
    """
    N, H, WC = x_ref.shape
    NH = N * H

    # Kick off the conv2 weight DMA immediately; w2 is not needed until after
    # conv1's three matmuls, so its HBM->VMEM transfer hides behind them.
    w2_cp = pltpu.make_async_copy(w2_hbm, w2_buf, w2_sem)
    w2_cp.start()

    def conv3x3(w_ref):
        # One MXU matmul per dy tap; dx taps + SAME padding along W are folded
        # into the block-tridiagonal weight.  Keep the plain accumulate chain
        # (review: lets v7x's MRB accumulate in place with a single drain).
        acc = jnp.zeros((NH, WC), jnp.float32)
        for dy in range(3):
            shifted = pad_ref[:, dy:dy + H, :].reshape(NH, WC)
            acc = acc + jnp.dot(shifted, w_ref[dy],
                                preferred_element_type=jnp.float32)
        return acc

    # Scratch is uninitialized VMEM on entry: zero ONLY the two halo rows, once.
    # The interior is fully overwritten before each conv and the halo stays 0.
    pad_ref[:, 0:1, :] = jnp.zeros((N, 1, WC), pad_ref.dtype)
    pad_ref[:, H + 1:H + 2, :] = jnp.zeros((N, 1, WC), pad_ref.dtype)

    x_f32 = x_ref[...]
    x2d = x_f32.reshape(NH, WC)                      # residual kept in f32

    # ---- conv1 (BN1 scale folded into w1) -> +shift -> relu ----
    pad_ref[:, 1:H + 1, :] = x_f32.astype(pad_ref.dtype)
    h1 = jnp.maximum(conv3x3(w1_ref) + t1_ref[...], 0.0)

    # ---- conv2 (BN2 scale folded into w2) -> +shift -> +residual -> relu ----
    pad_ref[:, 1:H + 1, :] = h1.reshape(N, H, WC).astype(pad_ref.dtype)
    w2_cp.wait()                                     # landed during conv1
    out_ref[...] = jnp.maximum(conv3x3(w2_buf) + t2_ref[...] + x2d, 0.0)


def _block_tridiag_weights(w_oihw, scale_out, W, dtype):
    """PyTorch (Cout, Cin, 3, 3) weight -> (3, W*C, W*C) block-tridiag stack.

    For tap dy, block (x, x') of the (W*C, W*C) matrix is w_hwio[dy, dx] with
    dx = x - x' + 1 when |x - x'| <= 1 and 0 otherwise (x = input column,
    x' = output column), i.e. PyTorch cross-correlation with SAME padding along
    W handled by the missing off-range blocks.  The per-output-channel BN scale
    `scale_out` is folded into the output-channel axis before casting.
    """
    w = jnp.transpose(w_oihw, (2, 3, 1, 0)).astype(jnp.float32)   # HWIO
    w = w * scale_out[None, None, None, :]                        # fold BN scale
    mats = []
    for dy in range(3):
        bt = sum(jnp.kron(jnp.eye(W, k=1 - dx, dtype=jnp.float32), w[dy, dx])
                 for dx in range(3))
        mats.append(bt)
    return jnp.stack(mats).astype(dtype)


def prepare_resblock_params(params, W, matmul_dtype=jnp.bfloat16):
    """One-time (per parameter set) fold of BN + bias into conv weights/shifts.

    Call once and reuse across forwards: the kron/stack expansion writes
    ~0.4-1.5 MiB of weights and must not sit on the per-call path.
    """
    (w1, b1, g1, be1, m1, v1,
     w2, b2, g2, be2, m2, v2) = params
    C = w1.shape[0]
    WC = W * C

    s1 = g1 / jnp.sqrt(v1 + EPS)
    t1 = be1 + (b1 - m1) * s1
    s2 = g2 / jnp.sqrt(v2 + EPS)
    t2 = be2 + (b2 - m2) * s2

    w1_bt = _block_tridiag_weights(w1, s1, W, matmul_dtype)   # (3, WC, WC)
    w2_bt = _block_tridiag_weights(w2, s2, W, matmul_dtype)

    # Per-channel shifts tiled across W -> lane-dense (1, W*C), kept in f32.
    t1_l = jnp.tile(t1, W).reshape(1, WC).astype(jnp.float32)
    t2_l = jnp.tile(t2, W).reshape(1, WC).astype(jnp.float32)
    return w1_bt, w2_bt, t1_l, t2_l


def resblock_pallas(x_nchw, prepared):
    w1_bt, w2_bt, t1_l, t2_l = prepared
    matmul_dtype = w1_bt.dtype

    # PyTorch NCHW -> NHWC, then merge (W, C) into a 256-wide lane dim.
    x = jnp.transpose(x_nchw, (0, 2, 3, 1)).astype(jnp.float32)
    N, H, W, C = x.shape
    WC = W * C
    x_in = x.reshape(N, H, WC)

    vmem = pl.BlockSpec(memory_space=pltpu.MemorySpace.VMEM)
    hbm = pl.BlockSpec(memory_space=pl.ANY)    # w2: manual overlapped DMA
    out2d = pl.pallas_call(
        resblock_kernel,
        out_shape=jax.ShapeDtypeStruct((N * H, WC), jnp.float32),
        in_specs=[vmem, vmem, hbm, vmem, vmem],
        out_specs=vmem,
        scratch_shapes=[
            pltpu.VMEM((N, H + 2, WC), matmul_dtype),   # row-padded activations
            pltpu.VMEM((3, WC, WC), matmul_dtype),      # w2 landing buffer
            pltpu.SemaphoreType.DMA(()),                # w2 copy semaphore
        ],
    )(x_in, w1_bt, w2_bt, t1_l, t2_l)

    return jnp.transpose(out2d.reshape(N, H, W, C), (0, 3, 1, 2))


def resblock_reference(x_nchw, params):
    """Pure-JAX reference (same semantics, eval-mode BN), f32 HIGHEST precision."""
    (w1, b1, g1, be1, m1, v1,
     w2, b2, g2, be2, m2, v2) = params
    x = jnp.transpose(x_nchw, (0, 2, 3, 1))

    def conv(h, w_oihw, b):
        w = jnp.transpose(w_oihw, (2, 3, 1, 0))
        y = jax.lax.conv_general_dilated(
            h, w, (1, 1), "SAME",
            dimension_numbers=("NHWC", "HWIO", "NHWC"),
            precision=jax.lax.Precision.HIGHEST)
        return y + b

    def bn(y, g, be, m, v):
        return (y - m) / jnp.sqrt(v + EPS) * g + be

    h = jax.nn.relu(bn(conv(x, w1, b1), g1, be1, m1, v1))
    y = jax.nn.relu(bn(conv(h, w2, b2), g2, be2, m2, v2) + x)
    return jnp.transpose(y, (0, 3, 1, 2))


if __name__ == "__main__":
    N, C, H, W = 2, 32, 8, 8          # num_hidden = 32
    keys = jax.random.split(jax.random.PRNGKey(0), 13)

    x = jax.random.normal(keys[0], (N, C, H, W), jnp.float32)

    def conv_bn_params(kw, kb, kg, kbe, km, kv):
        w = 0.1 * jax.random.normal(kw, (C, C, 3, 3), jnp.float32)   # OIHW
        b = 0.1 * jax.random.normal(kb, (C,), jnp.float32)
        g = 1.0 + 0.1 * jax.random.normal(kg, (C,), jnp.float32)
        be = 0.1 * jax.random.normal(kbe, (C,), jnp.float32)
        m = 0.1 * jax.random.normal(km, (C,), jnp.float32)
        v = jax.random.uniform(kv, (C,), jnp.float32, 0.5, 1.5)
        return w, b, g, be, m, v

    params = conv_bn_params(*keys[1:7]) + conv_bn_params(*keys[7:13])

    ref = jax.block_until_ready(resblock_reference(x, params))
    fwd = jax.jit(resblock_pallas)

    # 1) f32 matmul path: exact-structure check against the HIGHEST-precision
    #    f32 reference at tight tolerance.
    prep_f32 = prepare_resblock_params(params, W, matmul_dtype=jnp.float32)
    out_f32 = jax.block_until_ready(fwd(x, prep_f32))
    assert out_f32.shape == (N, C, H, W) and out_f32.dtype == jnp.float32
    np.testing.assert_allclose(np.asarray(out_f32), np.asarray(ref),
                               rtol=1e-2, atol=1e-2)

    # 2) Default (bf16 weights + activation scratch, f32 accumulation) path:
    #    tolerance sized for bf16 quantization through two K=288 convs.
    prep_bf16 = prepare_resblock_params(params, W)     # default bfloat16
    out_bf16 = jax.block_until_ready(fwd(x, prep_bf16))
    assert out_bf16.shape == (N, C, H, W) and out_bf16.dtype == jnp.float32
    np.testing.assert_allclose(np.asarray(out_bf16), np.asarray(ref),
                               rtol=5e-2, atol=5e-2)

    print("KERNEL_OK")
</pallas_src>

<mosaic_0001>
module attributes {stable_mosaic.version = 11 : i64} {
  func.func @resblock_kernel(%arg0: memref<2x8x256xf32, #tpu.memory_space<vmem>>, %arg1: memref<3x256x256xf32, #tpu.memory_space<vmem>>, %arg2: memref<3x256x256xf32, #tpu.memory_space<any>>, %arg3: memref<1x256xf32, #tpu.memory_space<vmem>>, %arg4: memref<1x256xf32, #tpu.memory_space<vmem>>, %arg5: memref<16x256xf32, #tpu.memory_space<vmem>>, %arg6: memref<2x10x256xf32, #tpu.memory_space<vmem>>, %arg7: memref<3x256x256xf32, #tpu.memory_space<vmem>>, %arg8: memref<!tpu.dma_semaphore, #tpu.memory_space<semaphore_mem>>) attributes {dimension_semantics = [], scalar_prefetch = 0 : i64, scratch_operands = 3 : i64, tpu.core_type = #tpu.core_type<tc>} {
    tpu.enqueue_dma source(%arg2 : memref<3x256x256xf32, #tpu.memory_space<any>>) target(%arg7 : memref<3x256x256xf32, #tpu.memory_space<vmem>>) target_semaphore(%arg8 : memref<!tpu.dma_semaphore, #tpu.memory_space<semaphore_mem>>)
    %cst = arith.constant 0.000000e+00 : f32
    %0 = vector.broadcast %cst : f32 to vector<2x1x256xf32>
    %c0 = arith.constant 0 : index
    %c0_0 = arith.constant 0 : index
    %c0_1 = arith.constant 0 : index
    %1 = vector.load %arg6[%c0, %c0_0, %c0_1] : memref<2x10x256xf32, #tpu.memory_space<vmem>>, vector<2x1x256xf32>
    tpu.vector_store %arg6[%c0, %c0_0, %c0_1], %0 {strides = array<i32>} : memref<2x10x256xf32, #tpu.memory_space<vmem>>, vector<2x1x256xf32>,
    %cst_2 = arith.constant 0.000000e+00 : f32
    %2 = vector.broadcast %cst_2 : f32 to vector<2x1x256xf32>
    %c0_3 = arith.constant 0 : index
    %c9 = arith.constant 9 : index
    %c0_4 = arith.constant 0 : index
    %3 = vector.load %arg6[%c0_3, %c9, %c0_4] : memref<2x10x256xf32, #tpu.memory_space<vmem>>, vector<2x1x256xf32>
    tpu.vector_store %arg6[%c0_3, %c9, %c0_4], %2 {strides = array<i32>} : memref<2x10x256xf32, #tpu.memory_space<vmem>>, vector<2x1x256xf32>,
    %c0_5 = arith.constant 0 : index
    %c0_6 = arith.constant 0 : index
    %c0_7 = arith.constant 0 : index
    %4 = vector.load %arg0[%c0_5, %c0_6, %c0_7] : memref<2x8x256xf32, #tpu.memory_space<vmem>>, vector<2x8x256xf32>
    %5 = vector.shape_cast %4 : vector<2x8x256xf32> to vector<16x256xf32>
    %c0_8 = arith.constant 0 : index
    %c1 = arith.constant 1 : index
    %c0_9 = arith.constant 0 : index
    %6 = vector.load %arg6[%c0_8, %c1, %c0_9] : memref<2x10x256xf32, #tpu.memory_space<vmem>>, vector<2x8x256xf32>
    tpu.vector_store %arg6[%c0_8, %c1, %c0_9], %4 {strides = array<i32>} : memref<2x10x256xf32, #tpu.memory_space<vmem>>, vector<2x8x256xf32>,
    %cst_10 = arith.constant 0.000000e+00 : f32
    %7 = vector.broadcast %cst_10 : f32 to vector<16x256xf32>
    %c0_11 = arith.constant 0 : index
    %c0_12 = arith.constant 0 : index
    %c0_13 = arith.constant 0 : index
    %8 = vector.load %arg6[%c0_11, %c0_12, %c0_13] : memref<2x10x256xf32, #tpu.memory_space<vmem>>, vector<2x8x256xf32>
    %9 = vector.shape_cast %8 : vector<2x8x256xf32> to vector<16x256xf32>
    %c0_14 = arith.constant 0 : index
    %c0_15 = arith.constant 0 : index
    %c0_16 = arith.constant 0 : index
    %10 = vector.load %arg1[%c0_14, %c0_15, %c0_16] : memref<3x256x256xf32, #tpu.memory_space<vmem>>, vector<1x256x256xf32>
    %11 = vector.shape_cast %10 : vector<1x256x256xf32> to vector<256x256xf32>
    %cst_17 = arith.constant dense<0.000000e+00> : vector<16x256xf32>
    %12 = tpu.matmul %9, %11, %cst_17 {dimension_numbers = #tpu.dot_dimension_numbers<[1], [0], [0], [1], [0, 0, 1, 1], [], []>} : vector<16x256xf32>, vector<256x256xf32>, vector<16x256xf32> -> vector<16x256xf32>
    %13 = arith.addf %7, %12 : vector<16x256xf32>
    %c0_18 = arith.constant 0 : index
    %c1_19 = arith.constant 1 : index
    %c0_20 = arith.constant 0 : index
    %14 = vector.load %arg6[%c0_18, %c1_19, %c0_20] : memref<2x10x256xf32, #tpu.memory_space<vmem>>, vector<2x8x256xf32>
    %15 = vector.shape_cast %14 : vector<2x8x256xf32> to vector<16x256xf32>
    %c1_21 = arith.constant 1 : index
    %c0_22 = arith.constant 0 : index
    %c0_23 = arith.constant 0 : index
    %16 = vector.load %arg1[%c1_21, %c0_22, %c0_23] : memref<3x256x256xf32, #tpu.memory_space<vmem>>, vector<1x256x256xf32>
    %17 = vector.shape_cast %16 : vector<1x256x256xf32> to vector<256x256xf32>
    %cst_24 = arith.constant dense<0.000000e+00> : vector<16x256xf32>
    %18 = tpu.matmul %15, %17, %cst_24 {dimension_numbers = #tpu.dot_dimension_numbers<[1], [0], [0], [1], [0, 0, 1, 1], [], []>} : vector<16x256xf32>, vector<256x256xf32>, vector<16x256xf32> -> vector<16x256xf32>
    %19 = arith.addf %13, %18 : vector<16x256xf32>
    %c0_25 = arith.constant 0 : index
    %c2 = arith.constant 2 : index
    %c0_26 = arith.constant 0 : index
    %20 = vector.load %arg6[%c0_25, %c2, %c0_26] : memref<2x10x256xf32, #tpu.memory_space<vmem>>, vector<2x8x256xf32>
    %21 = vector.shape_cast %20 : vector<2x8x256xf32> to vector<16x256xf32>
    %c2_27 = arith.constant 2 : index
    %c0_28 = arith.constant 0 : index
    %c0_29 = arith.constant 0 : index
    %22 = vector.load %arg1[%c2_27, %c0_28, %c0_29] : memref<3x256x256xf32, #tpu.memory_space<vmem>>, vector<1x256x256xf32>
    %23 = vector.shape_cast %22 : vector<1x256x256xf32> to vector<256x256xf32>
    %cst_30 = arith.constant dense<0.000000e+00> : vector<16x256xf32>
    %24 = tpu.matmul %21, %23, %cst_30 {dimension_numbers = #tpu.dot_dimension_numbers<[1], [0], [0], [1], [0, 0, 1, 1], [], []>} : vector<16x256xf32>, vector<256x256xf32>, vector<16x256xf32> -> vector<16x256xf32>
    %25 = arith.addf %19, %24 : vector<16x256xf32>
    %c0_31 = arith.constant 0 : index
    %c0_32 = arith.constant 0 : index
    %26 = vector.load %arg3[%c0_31, %c0_32] : memref<1x256xf32, #tpu.memory_space<vmem>>, vector<1x256xf32>
    %27 = vector.broadcast %26 : vector<1x256xf32> to vector<16x256xf32>
    %28 = arith.addf %25, %27 : vector<16x256xf32>
    %cst_33 = arith.constant 0.000000e+00 : f32
    %29 = vector.broadcast %cst_33 : f32 to vector<16x256xf32>
    %30 = arith.maximumf %28, %29 : vector<16x256xf32>
    %31 = vector.shape_cast %30 : vector<16x256xf32> to vector<2x8x256xf32>
    %c0_34 = arith.constant 0 : index
    %c1_35 = arith.constant 1 : index
    %c0_36 = arith.constant 0 : index
    %32 = vector.load %arg6[%c0_34, %c1_35, %c0_36] : memref<2x10x256xf32, #tpu.memory_space<vmem>>, vector<2x8x256xf32>
    tpu.vector_store %arg6[%c0_34, %c1_35, %c0_36], %31 {strides = array<i32>} : memref<2x10x256xf32, #tpu.memory_space<vmem>>, vector<2x8x256xf32>,
    tpu.wait_dma2 semaphore(%arg8 : memref<!tpu.dma_semaphore, #tpu.memory_space<semaphore_mem>>) src(%arg2 : memref<3x256x256xf32, #tpu.memory_space<any>>) dst(%arg7 : memref<3x256x256xf32, #tpu.memory_space<vmem>>)
    %cst_37 = arith.constant 0.000000e+00 : f32
    %33 = vector.broadcast %cst_37 : f32 to vector<16x256xf32>
    %c0_38 = arith.constant 0 : index
    %c0_39 = arith.constant 0 : index
    %c0_40 = arith.constant 0 : index
    %34 = vector.load %arg6[%c0_38, %c0_39, %c0_40] : memref<2x10x256xf32, #tpu.memory_space<vmem>>, vector<2x8x256xf32>
    %35 = vector.shape_cast %34 : vector<2x8x256xf32> to vector<16x256xf32>
    %c0_41 = arith.constant 0 : index
    %c0_42 = arith.constant 0 : index
    %c0_43 = arith.constant 0 : index
    %36 = vector.load %arg7[%c0_41, %c0_42, %c0_43] : memref<3x256x256xf32, #tpu.memory_space<vmem>>, vector<1x256x256xf32>
    %37 = vector.shape_cast %36 : vector<1x256x256xf32> to vector<256x256xf32>
    %cst_44 = arith.constant dense<0.000000e+00> : vector<16x256xf32>
    %38 = tpu.matmul %35, %37, %cst_44 {dimension_numbers = #tpu.dot_dimension_numbers<[1], [0], [0], [1], [0, 0, 1, 1], [], []>} : vector<16x256xf32>, vector<256x256xf32>, vector<16x256xf32> -> vector<16x256xf32>
    %39 = arith.addf %33, %38 : vector<16x256xf32>
    %c0_45 = arith.constant 0 : index
    %c1_46 = arith.constant 1 : index
    %c0_47 = arith.constant 0 : index
    %40 = vector.load %arg6[%c0_45, %c1_46, %c0_47] : memref<2x10x256xf32, #tpu.memory_space<vmem>>, vector<2x8x256xf32>
    %41 = vector.shape_cast %40 : vector<2x8x256xf32> to vector<16x256xf32>
    %c1_48 = arith.constant 1 : index
    %c0_49 = arith.constant 0 : index
    %c0_50 = arith.constant 0 : index
    %42 = vector.load %arg7[%c1_48, %c0_49, %c0_50] : memref<3x256x256xf32, #tpu.memory_space<vmem>>, vector<1x256x256xf32>
    %43 = vector.shape_cast %42 : vector<1x256x256xf32> to vector<256x256xf32>
    %cst_51 = arith.constant dense<0.000000e+00> : vector<16x256xf32>
    %44 = tpu.matmul %41, %43, %cst_51 {dimension_numbers = #tpu.dot_dimension_numbers<[1], [0], [0], [1], [0, 0, 1, 1], [], []>} : vector<16x256xf32>, vector<256x256xf32>, vector<16x256xf32> -> vector<16x256xf32>
    %45 = arith.addf %39, %44 : vector<16x256xf32>
    %c0_52 = arith.constant 0 : index
    %c2_53 = arith.constant 2 : index
    %c0_54 = arith.constant 0 : index
    %46 = vector.load %arg6[%c0_52, %c2_53, %c0_54] : memref<2x10x256xf32, #tpu.memory_space<vmem>>, vector<2x8x256xf32>
    %47 = vector.shape_cast %46 : vector<2x8x256xf32> to vector<16x256xf32>
    %c2_55 = arith.constant 2 : index
    %c0_56 = arith.constant 0 : index
    %c0_57 = arith.constant 0 : index
    %48 = vector.load %arg7[%c2_55, %c0_56, %c0_57] : memref<3x256x256xf32, #tpu.memory_space<vmem>>, vector<1x256x256xf32>
    %49 = vector.shape_cast %48 : vector<1x256x256xf32> to vector<256x256xf32>
    %cst_58 = arith.constant dense<0.000000e+00> : vector<16x256xf32>
    %50 = tpu.matmul %47, %49, %cst_58 {dimension_numbers = #tpu.dot_dimension_numbers<[1], [0], [0], [1], [0, 0, 1, 1], [], []>} : vector<16x256xf32>, vector<256x256xf32>, vector<16x256xf32> -> vector<16x256xf32>
    %51 = arith.addf %45, %50 : vector<16x256xf32>
    %c0_59 = arith.constant 0 : index
    %c0_60 = arith.constant 0 : index
    %52 = vector.load %arg4[%c0_59, %c0_60] : memref<1x256xf32, #tpu.memory_space<vmem>>, vector<1x256xf32>
    %53 = vector.broadcast %52 : vector<1x256xf32> to vector<16x256xf32>
    %54 = arith.addf %51, %53 : vector<16x256xf32>
    %55 = arith.addf %54, %5 : vector<16x256xf32>
    %cst_61 = arith.constant 0.000000e+00 : f32
    %56 = vector.broadcast %cst_61 : f32 to vector<16x256xf32>
    %57 = arith.maximumf %55, %56 : vector<16x256xf32>
    %c0_62 = arith.constant 0 : index
    %c0_63 = arith.constant 0 : index
    %58 = vector.load %arg5[%c0_62, %c0_63] : memref<16x256xf32, #tpu.memory_space<vmem>>, vector<16x256xf32>
    tpu.vector_store %arg5[%c0_62, %c0_63], %57 {strides = array<i32>} : memref<16x256xf32, #tpu.memory_space<vmem>>, vector<16x256xf32>,
    return
  }
}

</mosaic_0001>

<llo_original>
// kernel: resblock_pallas.1
$region0: #{resblock_pallas.1}
  #allocation0 [shape = 'u32[]', space=smem, size = 0x4, offset = 0x4, fixed_abs, tag = 'smem constant byte address 0x4 - core index']
  #allocation1 [shape = 'u32[144,128]{1,0:T(1,128)}', space=vmem, size = 0x12000, scoped, tag = 'internal scratch']
  #allocation2 [shape = 'f32[2,10,256]{2,1,0:T(8,128)}', space=vmem, size = 0x8000, scoped, tag = 'scratch operand']
  #allocation3 [shape = 'f32[3,256,256]{2,1,0:T(8,128)}', space=vmem, size = 0xc0000, scoped, tag = 'scratch operand']
  #allocation4 [shape = 's32[1]{0}', space=sflag, size = 0x4, scoped, tag = 'scratch operand']
  #allocation7 [shape = 's32[]', space=sflag, size = 0x4, offset = 0, fixed_abs, tag = 'sflag constant byte address 0x0 - dummy sync flag']
  #allocation8 [shape = 's32[]', space=sflag, size = 0x4, offset = 0, fixed_abs, tag = 'sflag constant byte address 0x0 - dummy sync flag']
  #allocation9 [shape = 'u32[]', space=smem, size = 0x4, offset = 0x44, fixed_abs, tag = 'smem constant byte address 0x44 - assertion arg 0']
  #allocation10 [shape = 'u32[]', space=smem, size = 0x4, offset = 0x48, fixed_abs, tag = 'smem constant byte address 0x48 - assertion arg 1']
  %s0 = inlined_call_operand.vmem [shape: f32[2,8,256], index: 0, kind: input, shape index: {}]
  %s1 = inlined_call_operand.hbm [shape: f32[3,256,256], index: 1, kind: input, shape index: {}]
  %s2 = inlined_call_operand.hbm [shape: f32[3,256,256], index: 2, kind: input, shape index: {}]
  %s3 = inlined_call_operand.vmem [shape: f32[1,256], index: 3, kind: input, shape index: {}]
  %s4 = inlined_call_operand.vmem [shape: f32[1,256], index: 4, kind: input, shape index: {}]
  %s5 = inlined_call_operand.vmem [shape: f32[16,256], index: 5, kind: output, shape index: {}]
  %s6 = sld [smem:[#allocation0]]
  $region34: #{resblock_pallas.1} parent=0
    _
  %s8 = ssub.s32 1, %s6
  %s9 = scalar_select 0, %s8, %s6
  $region1: #{resblock_pallas.1} parent=0
    #allocation5 [shape = 'u8[786432]{0}', space=vmem, size = 0xc0000, scoped, tag = 'input window, operand 1, single buffered']
    #allocation6 [shape = 's32[1]{0}', space=sflag, size = 0x4, scoped, tag = 'scoped memory for resblock_pallas.1']
    %10 = vsyncpa [#allocation6], 0
    // Predicated region
    $region2: #{resblock_pallas.1} parent=1 // pred_check
      _
    $region3: #{resblock_pallas.1} parent=1 // pred_check_branch
      %12 = sbr.rel (0) target = $region5
    $region4: #{resblock_pallas.1} parent=1 // pred_region
      _
    $region5: #{resblock_pallas.1} parent=1 // pred_fallthru
      _
    // Predicated region
    $region6: #{resblock_pallas.1} parent=1 // pred_check
      _
    $region7: #{resblock_pallas.1} parent=1 // pred_check_branch
      %14 = sbr.rel (0) target = $region9
    $region8: #{resblock_pallas.1} parent=1 // pred_region
      %s16 = ssub.s32 24576, 24576
      %17 = vsyncadd [#allocation6], %s16
      %s18 = sshll.u32 [#allocation5], 4
      %s19 = int_to_ptr.vmem [resolvable:$true] %s18
      %24 = dma.hbm_to_vmem [thread:$0]  %s1, 24576, %s19, [#allocation6], 256, 256, 16
    $region9: #{resblock_pallas.1} parent=1 // pred_fallthru
      _
    // Predicated region
    $region10: #{resblock_pallas.1} parent=1 // pred_check
      _
    $region11: #{resblock_pallas.1} parent=1 // pred_check_branch
      %26 = sbr.rel (0) target = $region13
    $region12: #{resblock_pallas.1} parent=1 // pred_region
      _
    $region13: #{resblock_pallas.1} parent=1 // pred_fallthru
      _
    // Predicated region
    $region14: #{resblock_pallas.1} parent=1 // pred_check
      _
    $region15: #{resblock_pallas.1} parent=1 // pred_check_branch
      %28 = sbr.rel (0) target = $region17
    $region16: #{resblock_pallas.1} parent=1 // pred_region
      _
    $region17: #{resblock_pallas.1} parent=1 // pred_fallthru
      _
    // Predicated region
    $region18: #{resblock_pallas.1} parent=1 // pred_check
      _
    $region19: #{resblock_pallas.1} parent=1 // pred_check_branch
      %30 = sbr.rel (0) target = $region21
    $region20: #{resblock_pallas.1} parent=1 // pred_region
      %31 = dma.done [#allocation6], 24576
    $region21: #{resblock_pallas.1} parent=1 // pred_fallthru
      _
    // Predicated region
    $region22: #{resblock_pallas.1} parent=1 // pred_check
      _
    $region23: #{resblock_pallas.1} parent=1 // pred_check_branch
      %33 = sbr.rel target = $region25
    $region24: #{resblock_pallas.1} parent=1 // pred_region
      %34 = sst [smem:[#allocation9]] [#allocation8]
      %35 = sst [smem:[#allocation10]] [#allocation7]
    $region25: #{resblock_pallas.1} parent=1 // pred_fallthru
      _
    %37 = shalt.err (0)
    %s39 = sshll.u32 [#allocation3], 4
    %s40 = int_to_ptr.vmem [resolvable:$true] %s39
    %42 = dma.hbm_to_vmem [thread:$0]  %s2, 24576, %s40, [#allocation4]
    %v43 = vlaneseq
    %vm44 = vcmp.ge.s32.totalorder %v43, 0
    %vm45 = vcmp.lt.s32.totalorder %v43, 256
    %vm46 = vmand %vm44, %vm45
    %47 = vst.msk [vmem:[#allocation2] ss:$8 sm:$0x3] %vm46, 0.0
    %48 = vst.msk [vmem:[#allocation2] ss:$8 sm:$0x0] %vm46, 0.0
    %s49 = scalar_lea.vmem [#allocation2], 32
    %50 = vst.msk [vmem:[%s49] ss:$8 sm:$0x3] %vm46, 0.0
    %51 = vst.msk [vmem:[%s49] ss:$8 sm:$0x0] %vm46, 0.0
    %s52 = scalar_lea.vmem [#allocation2], 17
    %53 = vst.msk [vmem:[%s52] ss:$8 sm:$0x3] %vm46, 0.0
    %54 = vst.msk [vmem:[%s52] ss:$8 sm:$0x0] %vm46, 0.0
    %s55 = scalar_lea.vmem [#allocation2], 49
    %56 = vst.msk [vmem:[%s55] ss:$8 sm:$0x3] %vm46, 0.0
    %57 = vst.msk [vmem:[%s55] ss:$8 sm:$0x0] %vm46, 0.0
    %v58 = vld [vmem:[%s0] sm:$0xff]
    %v59 = vld [vmem:[%s0 + $0x8] sm:$0xff]
    %v60 = vld [vmem:[%s0 + $0x10] sm:$0xff]
    %v61 = vld [vmem:[%s0 + $0x18] sm:$0xff]
    %v66 = vrot.slane %v58, 7
    %v67 = vrot.slane %v59, 7
    %v68 = vrot.slane %v60, 7
    %v69 = vrot.slane %v61, 7
    %74 = vst [vmem:[#allocation2] sm:$0xfe] %v66
    %75 = vst [vmem:[#allocation2 + $0x8] sm:$0xfe] %v67
    %76 = vst [vmem:[#allocation2 + $0x10] sm:$0x1] %v66
    %77 = vst [vmem:[#allocation2 + $0x18] sm:$0x1] %v67
    %78 = vst [vmem:[#allocation2 + $0x20] sm:$0xfe] %v68
    %79 = vst [vmem:[#allocation2 + $0x28] sm:$0xfe] %v69
    %80 = vst [vmem:[#allocation2 + $0x30] sm:$0x1] %v68
    %81 = vst [vmem:[#allocation2 + $0x38] sm:$0x1] %v69
    %v82 = vld [vmem:[#allocation2] sm:$0xff]
    %v83 = vld [vmem:[#allocation2 + $0x8] sm:$0xff]
    %v84 = vld [vmem:[#allocation2 + $0x20] sm:$0xff]
    %v85 = vld [vmem:[#allocation2 + $0x28] sm:$0xff]
    %v86 = vld [vmem:[#allocation5] sm:$0xff]
    %v87 = vld [vmem:[#allocation5 + $0x8] sm:$0xff]
    %v88 = vld [vmem:[#allocation5 + $0x10] sm:$0xff]
    %v89 = vld [vmem:[#allocation5 + $0x18] sm:$0xff]
    %v90 = vld [vmem:[#allocation5 + $0x20] sm:$0xff]
    %v91 = vld [vmem:[#allocation5 + $0x28] sm:$0xff]
    %v92 = vld [vmem:[#allocation5 + $0x30] sm:$0xff]
    %v93 = vld [vmem:[#allocation5 + $0x38] sm:$0xff]
    %v94 = vld [vmem:[#allocation5 + $0x40] sm:$0xff]
    %v95 = vld [vmem:[#allocation5 + $0x48] sm:$0xff]
    %v96 = vld [vmem:[#allocation5 + $0x50] sm:$0xff]
    %v97 = vld [vmem:[#allocation5 + $0x58] sm:$0xff]
    %v98 = vld [vmem:[#allocation5 + $0x60] sm:$0xff]
    %v99 = vld [vmem:[#allocation5 + $0x68] sm:$0xff]
    %v100 = vld [vmem:[#allocation5 + $0x70] sm:$0xff]
    %v101 = vld [vmem:[#allocation5 + $0x78] sm:$0xff]
    %v102 = vld [vmem:[#allocation5 + $0x80] sm:$0xff]
    %v103 = vld [vmem:[#allocation5 + $0x88] sm:$0xff]
    %v104 = vld [vmem:[#allocation5 + $0x90] sm:$0xff]
    %v105 = vld [vmem:[#allocation5 + $0x98] sm:$0xff]
    %v106 = vld [vmem:[#allocation5 + $0xa0] sm:$0xff]
    %v107 = vld [vmem:[#allocation5 + $0xa8] sm:$0xff]
    %v108 = vld [vmem:[#allocation5 + $0xb0] sm:$0xff]
    %v109 = vld [vmem:[#allocation5 + $0xb8] sm:$0xff]
    %v110 = vld [vmem:[#allocation5 + $0xc0] sm:$0xff]
    %v111 = vld [vmem:[#allocation5 + $0xc8] sm:$0xff]
    %v112 = vld [vmem:[#allocation5 + $0xd0] sm:$0xff]
    %v113 = vld [vmem:[#allocation5 + $0xd8] sm:$0xff]
    %v114 = vld [vmem:[#allocation5 + $0xe0] sm:$0xff]
    %v115 = vld [vmem:[#allocation5 + $0xe8] sm:$0xff]
    %v116 = vld [vmem:[#allocation5 + $0xf0] sm:$0xff]
    %v117 = vld [vmem:[#allocation5 + $0xf8] sm:$0xff]
    %v118 = vld [vmem:[#allocation5 + $0x100] sm:$0xff]
    %v119 = vld [vmem:[#allocation5 + $0x108] sm:$0xff]
    %v120 = vld [vmem:[#allocation5 + $0x110] sm:$0xff]
    %v121 = vld [vmem:[#allocation5 + $0x118] sm:$0xff]
    %v122 = vld [vmem:[#allocation5 + $0x120] sm:$0xff]
    %v123 = vld [vmem:[#allocation5 + $0x128] sm:$0xff]
    %v124 = vld [vmem:[#allocation5 + $0x130] sm:$0xff]
    %v125 = vld [vmem:[#allocation5 + $0x138] sm:$0xff]
    %v126 = vld [vmem:[#allocation5 + $0x140] sm:$0xff]
    %v127 = vld [vmem:[#allocation5 + $0x148] sm:$0xff]
    %v128 = vld [vmem:[#allocation5 + $0x150] sm:$0xff]
    %v129 = vld [vmem:[#allocation5 + $0x158] sm:$0xff]
    %v130 = vld [vmem:[#allocation5 + $0x160] sm:$0xff]
    %v131 = vld [vmem:[#allocation5 + $0x168] sm:$0xff]
    %v132 = vld [vmem:[#allocation5 + $0x170] sm:$0xff]
    %v133 = vld [vmem:[#allocation5 + $0x178] sm:$0xff]
    %v134 = vld [vmem:[#allocation5 + $0x180] sm:$0xff]
    %v135 = vld [vmem:[#allocation5 + $0x188] sm:$0xff]
    %v136 = vld [vmem:[#allocation5 + $0x190] sm:$0xff]
    %v137 = vld [vmem:[#allocation5 + $0x198] sm:$0xff]
    %v138 = vld [vmem:[#allocation5 + $0x1a0] sm:$0xff]
    %v139 = vld [vmem:[#allocation5 + $0x1a8] sm:$0xff]
    %v140 = vld [vmem:[#allocation5 + $0x1b0] sm:$0xff]
    %v141 = vld [vmem:[#allocation5 + $0x1b8] sm:$0xff]
    %v142 = vld [vmem:[#allocation5 + $0x1c0] sm:$0xff]
    %v143 = vld [vmem:[#allocation5 + $0x1c8] sm:$0xff]
    %v144 = vld [vmem:[#allocation5 + $0x1d0] sm:$0xff]
    %v145 = vld [vmem:[#allocation5 + $0x1d8] sm:$0xff]
    %v146 = vld [vmem:[#allocation5 + $0x1e0] sm:$0xff]
    %v147 = vld [vmem:[#allocation5 + $0x1e8] sm:$0xff]
    %v148 = vld [vmem:[#allocation5 + $0x1f0] sm:$0xff]
    %v149 = vld [vmem:[#allocation5 + $0x1f8] sm:$0xff]
    %v150 = vld [vmem:[#allocation2] sm:$0xfe]
    %v151 = vld [vmem:[#allocation2 + $0x8] sm:$0xfe]
    %v152 = vld [vmem:[#allocation2 + $0x10] sm:$0x1]
    %v153 = vld [vmem:[#allocation2 + $0x18] sm:$0x1]
    %v154 = vld [vmem:[#allocation2 + $0x20] sm:$0xfe]
    %v155 = vld [vmem:[#allocation2 + $0x28] sm:$0xfe]
    %v156 = vld [vmem:[#allocation2 + $0x30] sm:$0x1]
    %v157 = vld [vmem:[#allocation2 + $0x38] sm:$0x1]
    %vm166 = vcmask 1046528
    %v167 = vrot.slane %v150, 1
    %v168 = vrot.slane %v152, 1
    %v169 = vsel %vm166, %v167, %v168
    %v170 = vrot.slane %v151, 1
    %v171 = vrot.slane %v153, 1
    %v172 = vsel %vm166, %v170, %v171
    %v173 = vrot.slane %v154, 1
    %v174 = vrot.slane %v156, 1
    %v175 = vsel %vm166, %v173, %v174
    %v176 = vrot.slane %v155, 1
    %v177 = vrot.slane %v157, 1
    %v178 = vsel %vm166, %v176, %v177
    %s183 = scalar_lea.vmem [#allocation5], 512
    %v184 = vld [vmem:[%s183] sm:$0xff]
    %v185 = vld [vmem:[%s183 + $0x8] sm:$0xff]
    %v186 = vld [vmem:[%s183 + $0x10] sm:$0xff]
    %v187 = vld [vmem:[%s183 + $0x18] sm:$0xff]
    %v188 = vld [vmem:[%s183 + $0x20] sm:$0xff]
    %v189 = vld [vmem:[%s183 + $0x28] sm:$0xff]
    %v190 = vld [vmem:[%s183 + $0x30] sm:$0xff]
    %v191 = vld [vmem:[%s183 + $0x38] sm:$0xff]
    %v192 = vld [vmem:[%s183 + $0x40] sm:$0xff]
    %v193 = vld [vmem:[%s183 + $0x48] sm:$0xff]
    %v194 = vld [vmem:[%s183 + $0x50] sm:$0xff]
    %v195 = vld [vmem:[%s183 + $0x58] sm:$0xff]
    %v196 = vld [vmem:[%s183 + $0x60] sm:$0xff]
    %v197 = vld [vmem:[%s183 + $0x68] sm:$0xff]
    %v198 = vld [vmem:[%s183 + $0x70] sm:$0xff]
    %v199 = vld [vmem:[%s183 + $0x78] sm:$0xff]
    %v200 = vld [vmem:[%s183 + $0x80] sm:$0xff]
    %v201 = vld [vmem:[%s183 + $0x88] sm:$0xff]
    %v202 = vld [vmem:[%s183 + $0x90] sm:$0xff]
    %v203 = vld [vmem:[%s183 + $0x98] sm:$0xff]
    %v204 = vld [vmem:[%s183 + $0xa0] sm:$0xff]
    %v205 = vld [vmem:[%s183 + $0xa8] sm:$0xff]
    %v206 = vld [vmem:[%s183 + $0xb0] sm:$0xff]
    %v207 = vld [vmem:[%s183 + $0xb8] sm:$0xff]
    %v208 = vld [vmem:[%s183 + $0xc0] sm:$0xff]
    %v209 = vld [vmem:[%s183 + $0xc8] sm:$0xff]
    %v210 = vld [vmem:[%s183 + $0xd0] sm:$0xff]
    %v211 = vld [vmem:[%s183 + $0xd8] sm:$0xff]
    %v212 = vld [vmem:[%s183 + $0xe0] sm:$0xff]
    %v213 = vld [vmem:[%s183 + $0xe8] sm:$0xff]
    %v214 = vld [vmem:[%s183 + $0xf0] sm:$0xff]
    %v215 = vld [vmem:[%s183 + $0xf8] sm:$0xff]
    %v216 = vld [vmem:[%s183 + $0x100] sm:$0xff]
    %v217 = vld [vmem:[%s183 + $0x108] sm:$0xff]
    %v218 = vld [vmem:[%s183 + $0x110] sm:$0xff]
    %v219 = vld [vmem:[%s183 + $0x118] sm:$0xff]
    %v220 = vld [vmem:[%s183 + $0x120] sm:$0xff]
    %v221 = vld [vmem:[%s183 + $0x128] sm:$0xff]
    %v222 = vld [vmem:[%s183 + $0x130] sm:$0xff]
    %v223 = vld [vmem:[%s183 + $0x138] sm:$0xff]
    %v224 = vld [vmem:[%s183 + $0x140] sm:$0xff]
    %v225 = vld [vmem:[%s183 + $0x148] sm:$0xff]
    %v226 = vld [vmem:[%s183 + $0x150] sm:$0xff]
    %v227 = vld [vmem:[%s183 + $0x158] sm:$0xff]
    %v228 = vld [vmem:[%s183 + $0x160] sm:$0xff]
    %v229 = vld [vmem:[%s183 + $0x168] sm:$0xff]
    %v230 = vld [vmem:[%s183 + $0x170] sm:$0xff]
    %v231 = vld [vmem:[%s183 + $0x178] sm:$0xff]
    %v232 = vld [vmem:[%s183 + $0x180] sm:$0xff]
    %v233 = vld [vmem:[%s183 + $0x188] sm:$0xff]
    %v234 = vld [vmem:[%s183 + $0x190] sm:$0xff]
    %v235 = vld [vmem:[%s183 + $0x198] sm:$0xff]
    %v236 = vld [vmem:[%s183 + $0x1a0] sm:$0xff]
    %v237 = vld [vmem:[%s183 + $0x1a8] sm:$0xff]
    %v238 = vld [vmem:[%s183 + $0x1b0] sm:$0xff]
    %v239 = vld [vmem:[%s183 + $0x1b8] sm:$0xff]
    %v240 = vld [vmem:[%s183 + $0x1c0] sm:$0xff]
    %v241 = vld [vmem:[%s183 + $0x1c8] sm:$0xff]
    %v242 = vld [vmem:[%s183 + $0x1d0] sm:$0xff]
    %v243 = vld [vmem:[%s183 + $0x1d8] sm:$0xff]
    %v244 = vld [vmem:[%s183 + $0x1e0] sm:$0xff]
    %v245 = vld [vmem:[%s183 + $0x1e8] sm:$0xff]
    %v246 = vld [vmem:[%s183 + $0x1f0] sm:$0xff]
    %v247 = vld [vmem:[%s183 + $0x1f8] sm:$0xff]
    %248 = vmatprep.subr.mxu0 %v185
    %249 = vmatpush1.msra.mxu0 %v184
    %250 = vmatprep.subr.mxu0 %v187
    %251 = vmatpush1.msra.mxu0 %v186
    %252 = vmatprep.subr.mxu0 %v189
    %253 = vmatpush1.msra.mxu0 %v188
    %254 = vmatprep.subr.mxu0 %v191
    %255 = vmatpush1.msra.mxu0 %v190
    %256 = vmatprep.subr.mxu0 %v193
    %257 = vmatpush1.msra.mxu0 %v192
    %258 = vmatprep.subr.mxu0 %v195
    %259 = vmatpush1.msra.mxu0 %v194
    %260 = vmatprep.subr.mxu0 %v197
    %261 = vmatpush1.msra.mxu0 %v196
    %262 = vmatprep.subr.mxu0 %v199
    %263 = vmatpush1.msra.mxu0 %v198
    %264 = vmatprep.subr.mxu0 %v201
    %265 = vmatpush1.msra.mxu0 %v200
    %266 = vmatprep.subr.mxu0 %v203
    %267 = vmatpush1.msra.mxu0 %v202
    %268 = vmatprep.subr.mxu0 %v205
    %269 = vmatpush1.msra.mxu0 %v204
    %270 = vmatprep.subr.mxu0 %v207
    %271 = vmatpush1.msra.mxu0 %v206
    %272 = vmatprep.subr.mxu0 %v209
    %273 = vmatpush1.msra.mxu0 %v208
    %274 = vmatprep.subr.mxu0 %v211
    %275 = vmatpush1.msra.mxu0 %v210
    %276 = vmatprep.subr.mxu0 %v213
    %277 = vmatpush1.msra.mxu0 %v212
    %278 = vmatprep.subr.mxu0 %v215
    %279 = vmatpush1.msra.mxu0 %v214
    %280 = vmatprep.subr.mxu0 %v217
    %281 = vmatpush1.msra.mxu0 %v216
    %282 = vmatprep.subr.mxu0 %v219
    %283 = vmatpush1.msra.mxu0 %v218
    %284 = vmatprep.subr.mxu0 %v221
    %285 = vmatpush1.msra.mxu0 %v220
    %286 = vmatprep.subr.mxu0 %v223
    %287 = vmatpush1.msra.mxu0 %v222
    %288 = vmatprep.subr.mxu0 %v225
    %289 = vmatpush1.msra.mxu0 %v224
    %290 = vmatprep.subr.mxu0 %v227
    %291 = vmatpush1.msra.mxu0 %v226
    %292 = vmatprep.subr.mxu0 %v229
    %293 = vmatpush1.msra.mxu0 %v228
    %294 = vmatprep.subr.mxu0 %v231
    %295 = vmatpush1.msra.mxu0 %v230
    %296 = vmatprep.subr.mxu0 %v233
    %297 = vmatpush1.msra.mxu0 %v232
    %298 = vmatprep.subr.mxu0 %v235
    %299 = vmatpush1.msra.mxu0 %v234
    %300 = vmatprep.subr.mxu0 %v237
    %301 = vmatpush1.msra.mxu0 %v236
    %302 = vmatprep.subr.mxu0 %v239
    %303 = vmatpush1.msra.mxu0 %v238
    %304 = vmatprep.subr.mxu0 %v241
    %305 = vmatpush1.msra.mxu0 %v240
    %306 = vmatprep.subr.mxu0 %v243
    %307 = vmatpush1.msra.mxu0 %v242
    %308 = vmatprep.subr.mxu0 %v245
    %309 = vmatpush1.msra.mxu0 %v244
    %310 = vmatprep.subr.mxu0 %v247
    %311 = vmatpush1.msra.mxu0 %v246
    %312 = vmatprep.mubr.f32.mxu0 %v172
    %313 = vmatmul.mubr.f32.gmra.mrb[0].mxu0 %v169
    %v314 = vpop.f32.mrb[0].mxu0
    %v315 = vadd.f32 0.0, %v314
    %v316 = vpop.f32.mrb[0].mxu0
    %v317 = vadd.f32 0.0, %v316
    %318 = vmatprep.mubr.f32.mxu0 %v178
    %319 = vmatmul.mubr.f32.gmra.mrb[0].mxu0 %v175
    %v320 = vpop.f32.mrb[0].mxu0
    %v321 = vadd.f32 0.0, %v320
    %v322 = vpop.f32.mrb[0].mxu0
    %v323 = vadd.f32 0.0, %v322
    %324 = vdwg.mxu0
    %325 = vmatprep.subr.mxu0 %v87
    %326 = vmatpush1.msra.mxu0 %v86
    %327 = vmatprep.subr.mxu0 %v89
    %328 = vmatpush1.msra.mxu0 %v88
    %329 = vmatprep.subr.mxu0 %v91
    %330 = vmatpush1.msra.mxu0 %v90
    %331 = vmatprep.subr.mxu0 %v93
    %332 = vmatpush1.msra.mxu0 %v92
    %333 = vmatprep.subr.mxu0 %v95
    %334 = vmatpush1.msra.mxu0 %v94
    %335 = vmatprep.subr.mxu0 %v97
    %336 = vmatpush1.msra.mxu0 %v96
    %337 = vmatprep.subr.mxu0 %v99
    %338 = vmatpush1.msra.mxu0 %v98
    %339 = vmatprep.subr.mxu0 %v101
    %340 = vmatpush1.msra.mxu0 %v100
    %341 = vmatprep.subr.mxu0 %v103
    %342 = vmatpush1.msra.mxu0 %v102
    %343 = vmatprep.subr.mxu0 %v105
    %344 = vmatpush1.msra.mxu0 %v104
    %345 = vmatprep.subr.mxu0 %v107
    %346 = vmatpush1.msra.mxu0 %v106
    %347 = vmatprep.subr.mxu0 %v109
    %348 = vmatpush1.msra.mxu0 %v108
    %349 = vmatprep.subr.mxu0 %v111
    %350 = vmatpush1.msra.mxu0 %v110
    %351 = vmatprep.subr.mxu0 %v113
    %352 = vmatpush1.msra.mxu0 %v112
    %353 = vmatprep.subr.mxu0 %v115
    %354 = vmatpush1.msra.mxu0 %v114
    %355 = vmatprep.subr.mxu0 %v117
    %356 = vmatpush1.msra.mxu0 %v116
    %357 = vmatprep.subr.mxu0 %v119
    %358 = vmatpush1.msra.mxu0 %v118
    %359 = vmatprep.subr.mxu0 %v121
    %360 = vmatpush1.msra.mxu0 %v120
    %361 = vmatprep.subr.mxu0 %v123
    %362 = vmatpush1.msra.mxu0 %v122
    %363 = vmatprep.subr.mxu0 %v125
    %364 = vmatpush1.msra.mxu0 %v124
    %365 = vmatprep.subr.mxu0 %v127
    %366 = vmatpush1.msra.mxu0 %v126
    %367 = vmatprep.subr.mxu0 %v129
    %368 = vmatpush1.msra.mxu0 %v128
    %369 = vmatprep.subr.mxu0 %v131
    %370 = vmatpush1.msra.mxu0 %v130
    %371 = vmatprep.subr.mxu0 %v133
    %372 = vmatpush1.msra.mxu0 %v132
    %373 = vmatprep.subr.mxu0 %v135
    %374 = vmatpush1.msra.mxu0 %v134
    %375 = vmatprep.subr.mxu0 %v137
    %376 = vmatpush1.msra.mxu0 %v136
    %377 = vmatprep.subr.mxu0 %v139
    %378 = vmatpush1.msra.mxu0 %v138
    %379 = vmatprep.subr.mxu0 %v141
    %380 = vmatpush1.msra.mxu0 %v140
    %381 = vmatprep.subr.mxu0 %v143
    %382 = vmatpush1.msra.mxu0 %v142
    %383 = vmatprep.subr.mxu0 %v145
    %384 = vmatpush1.msra.mxu0 %v144
    %385 = vmatprep.subr.mxu0 %v147
    %386 = vmatpush1.msra.mxu0 %v146
    %387 = vmatprep.subr.mxu0 %v149
    %388 = vmatpush1.msra.mxu0 %v148
    %389 = vmatprep.mubr.f32.mxu0 %v83
    %390 = vmatmul.mubr.f32.gmra.mrb[0].mxu0 %v82
    %v391 = vpop.f32.mrb[0].mxu0
    %v392 = vadd.f32 %v315, %v391
    %v393 = vpop.f32.mrb[0].mxu0
    %v394 = vadd.f32 %v317, %v393
    %395 = vmatprep.mubr.f32.mxu0 %v85
    %396 = vmatmul.mubr.f32.gmra.mrb[0].mxu0 %v84
    %v397 = vpop.f32.mrb[0].mxu0
    %v398 = vadd.f32 %v321, %v397
    %v399 = vpop.f32.mrb[0].mxu0
    %v400 = vadd.f32 %v323, %v399
    %401 = vdwg.mxu0
    %v402 = vld [vmem:[#allocation2] sm:$0xfc]
    %v403 = vld [vmem:[#allocation2 + $0x8] sm:$0xfc]
    %v404 = vld [vmem:[#allocation2 + $0x10] sm:$0x3]
    %v405 = vld [vmem:[#allocation2 + $0x18] sm:$0x3]
    %v406 = vld [vmem:[#allocation2 + $0x20] sm:$0xfc]
    %v407 = vld [vmem:[#allocation2 + $0x28] sm:$0xfc]
    %v408 = vld [vmem:[#allocation2 + $0x30] sm:$0x3]
    %v409 = vld [vmem:[#allocation2 + $0x38] sm:$0x3]
    %vm418 = vcmask 1045504
    %v419 = vrot.slane %v402, 2
    %v420 = vrot.slane %v404, 2
    %v421 = vsel %vm418, %v419, %v420
    %v422 = vrot.slane %v403, 2
    %v423 = vrot.slane %v405, 2
    %v424 = vsel %vm418, %v422, %v423
    %v425 = vrot.slane %v406, 2
    %v426 = vrot.slane %v408, 2
    %v427 = vsel %vm418, %v425, %v426
    %v428 = vrot.slane %v407, 2
    %v429 = vrot.slane %v409, 2
    %v430 = vsel %vm418, %v428, %v429
    %s435 = scalar_lea.vmem [#allocation5], 1024
    %v436 = vld [vmem:[%s435] sm:$0xff]
    %v437 = vld [vmem:[%s435 + $0x8] sm:$0xff]
    %v438 = vld [vmem:[%s435 + $0x10] sm:$0xff]
    %v439 = vld [vmem:[%s435 + $0x18] sm:$0xff]
    %v440 = vld [vmem:[%s435 + $0x20] sm:$0xff]
    %v441 = vld [vmem:[%s435 + $0x28] sm:$0xff]
    %v442 = vld [vmem:[%s435 + $0x30] sm:$0xff]
    %v443 = vld [vmem:[%s435 + $0x38] sm:$0xff]
    %v444 = vld [vmem:[%s435 + $0x40] sm:$0xff]
    %v445 = vld [vmem:[%s435 + $0x48] sm:$0xff]
    %v446 = vld [vmem:[%s435 + $0x50] sm:$0xff]
    %v447 = vld [vmem:[%s435 + $0x58] sm:$0xff]
    %v448 = vld [vmem:[%s435 + $0x60] sm:$0xff]
    %v449 = vld [vmem:[%s435 + $0x68] sm:$0xff]
    %v450 = vld [vmem:[%s435 + $0x70] sm:$0xff]
    %v451 = vld [vmem:[%s435 + $0x78] sm:$0xff]
    %v452 = vld [vmem:[%s435 + $0x80] sm:$0xff]
    %v453 = vld [vmem:[%s435 + $0x88] sm:$0xff]
    %v454 = vld [vmem:[%s435 + $0x90] sm:$0xff]
    %v455 = vld [vmem:[%s435 + $0x98] sm:$0xff]
    %v456 = vld [vmem:[%s435 + $0xa0] sm:$0xff]
    %v457 = vld [vmem:[%s435 + $0xa8] sm:$0xff]
    %v458 = vld [vmem:[%s435 + $0xb0] sm:$0xff]
    %v459 = vld [vmem:[%s435 + $0xb8] sm:$0xff]
    %v460 = vld [vmem:[%s435 + $0xc0] sm:$0xff]
    %v461 = vld [vmem:[%s435 + $0xc8] sm:$0xff]
    %v462 = vld [vmem:[%s435 + $0xd0] sm:$0xff]
    %v463 = vld [vmem:[%s435 + $0xd8] sm:$0xff]
    %v464 = vld [vmem:[%s435 + $0xe0] sm:$0xff]
    %v465 = vld [vmem:[%s435 + $0xe8] sm:$0xff]
    %v466 = vld [vmem:[%s435 + $0xf0] sm:$0xff]
    %v467 = vld [vmem:[%s435 + $0xf8] sm:$0xff]
    %v468 = vld [vmem:[%s435 + $0x100] sm:$0xff]
    %v469 = vld [vmem:[%s435 + $0x108] sm:$0xff]
    %v470 = vld [vmem:[%s435 + $0x110] sm:$0xff]
    %v471 = vld [vmem:[%s435 + $0x118] sm:$0xff]
    %v472 = vld [vmem:[%s435 + $0x120] sm:$0xff]
    %v473 = vld [vmem:[%s435 + $0x128] sm:$0xff]
    %v474 = vld [vmem:[%s435 + $0x130] sm:$0xff]
    %v475 = vld [vmem:[%s435 + $0x138] sm:$0xff]
    %v476 = vld [vmem:[%s435 + $0x140] sm:$0xff]
    %v477 = vld [vmem:[%s435 + $0x148] sm:$0xff]
    %v478 = vld [vmem:[%s435 + $0x150] sm:$0xff]
    %v479 = vld [vmem:[%s435 + $0x158] sm:$0xff]
    %v480 = vld [vmem:[%s435 + $0x160] sm:$0xff]
    %v481 = vld [vmem:[%s435 + $0x168] sm:$0xff]
    %v482 = vld [vmem:[%s435 + $0x170] sm:$0xff]
    %v483 = vld [vmem:[%s435 + $0x178] sm:$0xff]
    %v484 = vld [vmem:[%s435 + $0x180] sm:$0xff]
    %v485 = vld [vmem:[%s435 + $0x188] sm:$0xff]
    %v486 = vld [vmem:[%s435 + $0x190] sm:$0xff]
    %v487 = vld [vmem:[%s435 + $0x198] sm:$0xff]
    %v488 = vld [vmem:[%s435 + $0x1a0] sm:$0xff]
    %v489 = vld [vmem:[%s435 + $0x1a8] sm:$0xff]
    %v490 = vld [vmem:[%s435 + $0x1b0] sm:$0xff]
    %v491 = vld [vmem:[%s435 + $0x1b8] sm:$0xff]
    %v492 = vld [vmem:[%s435 + $0x1c0] sm:$0xff]
    %v493 = vld [vmem:[%s435 + $0x1c8] sm:$0xff]
    %v494 = vld [vmem:[%s435 + $0x1d0] sm:$0xff]
    %v495 = vld [vmem:[%s435 + $0x1d8] sm:$0xff]
    %v496 = vld [vmem:[%s435 + $0x1e0] sm:$0xff]
    %v497 = vld [vmem:[%s435 + $0x1e8] sm:$0xff]
    %v498 = vld [vmem:[%s435 + $0x1f0] sm:$0xff]
    %v499 = vld [vmem:[%s435 + $0x1f8] sm:$0xff]
    %500 = vmatprep.subr.mxu0 %v437
    %501 = vmatpush1.msra.mxu0 %v436
    %502 = vmatprep.subr.mxu0 %v439
    %503 = vmatpush1.msra.mxu0 %v438
    %504 = vmatprep.subr.mxu0 %v441
    %505 = vmatpush1.msra.mxu0 %v440
    %506 = vmatprep.subr.mxu0 %v443
    %507 = vmatpush1.msra.mxu0 %v442
    %508 = vmatprep.subr.mxu0 %v445
    %509 = vmatpush1.msra.mxu0 %v444
    %510 = vmatprep.subr.mxu0 %v447
    %511 = vmatpush1.msra.mxu0 %v446
    %512 = vmatprep.subr.mxu0 %v449
    %513 = vmatpush1.msra.mxu0 %v448
    %514 = vmatprep.subr.mxu0 %v451
    %515 = vmatpush1.msra.mxu0 %v450
    %516 = vmatprep.subr.mxu0 %v453
    %517 = vmatpush1.msra.mxu0 %v452
    %518 = vmatprep.subr.mxu0 %v455
    %519 = vmatpush1.msra.mxu0 %v454
    %520 = vmatprep.subr.mxu0 %v457
    %521 = vmatpush1.msra.mxu0 %v456
    %522 = vmatprep.subr.mxu0 %v459
    %523 = vmatpush1.msra.mxu0 %v458
    %524 = vmatprep.subr.mxu0 %v461
    %525 = vmatpush1.msra.mxu0 %v460
    %526 = vmatprep.subr.mxu0 %v463
    %527 = vmatpush1.msra.mxu0 %v462
    %528 = vmatprep.subr.mxu0 %v465
    %529 = vmatpush1.msra.mxu0 %v464
    %530 = vmatprep.subr.mxu0 %v467
    %531 = vmatpush1.msra.mxu0 %v466
    %532 = vmatprep.subr.mxu0 %v469
    %533 = vmatpush1.msra.mxu0 %v468
    %534 = vmatprep.subr.mxu0 %v471
    %535 = vmatpush1.msra.mxu0 %v470
    %536 = vmatprep.subr.mxu0 %v473
    %537 = vmatpush1.msra.mxu0 %v472
    %538 = vmatprep.subr.mxu0 %v475
    %539 = vmatpush1.msra.mxu0 %v474
    %540 = vmatprep.subr.mxu0 %v477
    %541 = vmatpush1.msra.mxu0 %v476
    %542 = vmatprep.subr.mxu0 %v479
    %543 = vmatpush1.msra.mxu0 %v478
    %544 = vmatprep.subr.mxu0 %v481
    %545 = vmatpush1.msra.mxu0 %v480
    %546 = vmatprep.subr.mxu0 %v483
    %547 = vmatpush1.msra.mxu0 %v482
    %548 = vmatprep.subr.mxu0 %v485
    %549 = vmatpush1.msra.mxu0 %v484
    %550 = vmatprep.subr.mxu0 %v487
    %551 = vmatpush1.msra.mxu0 %v486
    %552 = vmatprep.subr.mxu0 %v489
    %553 = vmatpush1.msra.mxu0 %v488
    %554 = vmatprep.subr.mxu0 %v491
    %555 = vmatpush1.msra.mxu0 %v490
    %556 = vmatprep.subr.mxu0 %v493
    %557 = vmatpush1.msra.mxu0 %v492
    %558 = vmatprep.subr.mxu0 %v495
    %559 = vmatpush1.msra.mxu0 %v494
    %560 = vmatprep.subr.mxu0 %v497
    %561 = vmatpush1.msra.mxu0 %v496
    %562 = vmatprep.subr.mxu0 %v499
    %563 = vmatpush1.msra.mxu0 %v498
    %564 = vmatprep.mubr.f32.mxu0 %v424
    %565 = vmatmul.mubr.f32.gmra.mrb[0].mxu0 %v421
    %v566 = vpop.f32.mrb[0].mxu0
    %v567 = vadd.f32 0.0, %v566
    %v568 = vpop.f32.mrb[0].mxu0
    %v569 = vadd.f32 0.0, %v568
    %570 = vmatprep.mubr.f32.mxu0 %v430
    %571 = vmatmul.mubr.f32.gmra.mrb[0].mxu0 %v427
    %v572 = vpop.f32.mrb[0].mxu0
    %v573 = vadd.f32 0.0, %v572
    %v574 = vpop.f32.mrb[0].mxu0
    %v575 = vadd.f32 0.0, %v574
    %576 = vdwg.mxu0
    %v577 = vadd.f32 %v392, %v567
    %v578 = vadd.f32 %v394, %v569
    %v579 = vadd.f32 %v398, %v573
    %v580 = vadd.f32 %v400, %v575
    %v581 = vld [vmem:[%s3] sm:$0x3]
    %v583 = vlaneseq
    %v584 = vshrl.u32 %v583, 7
    %v585 = vsub.s32 0, %v584
    %v586 = vrot.slane %v581, %v585
    %v587 = vlaneseq
    %v588 = vshrl.u32 %v587, 7
    %v589 = vsub.s32 1, %v588
    %v590 = vrot.slane %v581, %v589
    %v593 = vadd.f32 %v577, %v586
    %v594 = vadd.f32 %v578, %v590
    %v595 = vadd.f32 %v579, %v586
    %v596 = vadd.f32 %v580, %v590
    %v597 = vmax.f32 %v593, 0.0
    %v598 = vmax.f32 %v594, 0.0
    %v599 = vmax.f32 %v595, 0.0
    %v600 = vmax.f32 %v596, 0.0
    %v605 = vrot.slane %v597, 7
    %v606 = vrot.slane %v598, 7
    %v607 = vrot.slane %v599, 7
    %v608 = vrot.slane %v600, 7
    %613 = vst [vmem:[#allocation2] sm:$0xfe] %v605
    %614 = vst [vmem:[#allocation2 + $0x8] sm:$0xfe] %v606
    %615 = vst [vmem:[#allocation2 + $0x10] sm:$0x1] %v605
    %616 = vst [vmem:[#allocation2 + $0x18] sm:$0x1] %v606
    %617 = vst [vmem:[#allocation2 + $0x20] sm:$0xfe] %v607
    %618 = vst [vmem:[#allocation2 + $0x28] sm:$0xfe] %v608
    %619 = vst [vmem:[#allocation2 + $0x30] sm:$0x1] %v607
    %620 = vst [vmem:[#allocation2 + $0x38] sm:$0x1] %v608
    %s621 = smul.u32 8, 3
    %s622 = smul.u32 %s621, 32
    %s623 = smul.u32 %s622, 2
    %s624 = sshll.u32 %s623, 4
    %625 = dma.done [#allocation4], %s624
    %v626 = vld [vmem:[#allocation2] sm:$0xff]
    %v627 = vld [vmem:[#allocation2 + $0x8] sm:$0xff]
    %v628 = vld [vmem:[#allocation2 + $0x20] sm:$0xff]
    %v629 = vld [vmem:[#allocation2 + $0x28] sm:$0xff]
    %v630 = vld [vmem:[#allocation3] sm:$0xff]
    %v631 = vld [vmem:[#allocation3 + $0x8] sm:$0xff]
    %v632 = vld [vmem:[#allocation3 + $0x10] sm:$0xff]
    %v633 = vld [vmem:[#allocation3 + $0x18] sm:$0xff]
    %v634 = vld [vmem:[#allocation3 + $0x20] sm:$0xff]
    %v635 = vld [vmem:[#allocation3 + $0x28] sm:$0xff]
    %v636 = vld [vmem:[#allocation3 + $0x30] sm:$0xff]
    %v637 = vld [vmem:[#allocation3 + $0x38] sm:$0xff]
    %v638 = vld [vmem:[#allocation3 + $0x40] sm:$0xff]
    %v639 = vld [vmem:[#allocation3 + $0x48] sm:$0xff]
    %v640 = vld [vmem:[#allocation3 + $0x50] sm:$0xff]
    %v641 = vld [vmem:[#allocation3 + $0x58] sm:$0xff]
    %v642 = vld [vmem:[#allocation3 + $0x60] sm:$0xff]
    %v643 = vld [vmem:[#allocation3 + $0x68] sm:$0xff]
    %v644 = vld [vmem:[#allocation3 + $0x70] sm:$0xff]
    %v645 = vld [vmem:[#allocation3 + $0x78] sm:$0xff]
    %v646 = vld [vmem:[#allocation3 + $0x80] sm:$0xff]
    %v647 = vld [vmem:[#allocation3 + $0x88] sm:$0xff]
    %v648 = vld [vmem:[#allocation3 + $0x90] sm:$0xff]
    %v649 = vld [vmem:[#allocation3 + $0x98] sm:$0xff]
    %v650 = vld [vmem:[#allocation3 + $0xa0] sm:$0xff]
    %v651 = vld [vmem:[#allocation3 + $0xa8] sm:$0xff]
    %v652 = vld [vmem:[#allocation3 + $0xb0] sm:$0xff]
    %v653 = vld [vmem:[#allocation3 + $0xb8] sm:$0xff]
    %v654 = vld [vmem:[#allocation3 + $0xc0] sm:$0xff]
    %v655 = vld [vmem:[#allocation3 + $0xc8] sm:$0xff]
    %v656 = vld [vmem:[#allocation3 + $0xd0] sm:$0xff]
    %v657 = vld [vmem:[#allocation3 + $0xd8] sm:$0xff]
    %v658 = vld [vmem:[#allocation3 + $0xe0] sm:$0xff]
    %v659 = vld [vmem:[#allocation3 + $0xe8] sm:$0xff]
    %v660 = vld [vmem:[#allocation3 + $0xf0] sm:$0xff]
    %v661 = vld [vmem:[#allocation3 + $0xf8] sm:$0xff]
    %v662 = vld [vmem:[#allocation3 + $0x100] sm:$0xff]
    %v663 = vld [vmem:[#allocation3 + $0x108] sm:$0xff]
    %v664 = vld [vmem:[#allocation3 + $0x110] sm:$0xff]
    %v665 = vld [vmem:[#allocation3 + $0x118] sm:$0xff]
    %v666 = vld [vmem:[#allocation3 + $0x120] sm:$0xff]
    %v667 = vld [vmem:[#allocation3 + $0x128] sm:$0xff]
    %v668 = vld [vmem:[#allocation3 + $0x130] sm:$0xff]
    %v669 = vld [vmem:[#allocation3 + $0x138] sm:$0xff]
    %v670 = vld [vmem:[#allocation3 + $0x140] sm:$0xff]
    %v671 = vld [vmem:[#allocation3 + $0x148] sm:$0xff]
    %v672 = vld [vmem:[#allocation3 + $0x150] sm:$0xff]
    %v673 = vld [vmem:[#allocation3 + $0x158] sm:$0xff]
    %v674 = vld [vmem:[#allocation3 + $0x160] sm:$0xff]
    %v675 = vld [vmem:[#allocation3 + $0x168] sm:$0xff]
    %v676 = vld [vmem:[#allocation3 + $0x170] sm:$0xff]
    %v677 = vld [vmem:[#allocation3 + $0x178] sm:$0xff]
    %v678 = vld [vmem:[#allocation3 + $0x180] sm:$0xff]
    %v679 = vld [vmem:[#allocation3 + $0x188] sm:$0xff]
    %v680 = vld [vmem:[#allocation3 + $0x190] sm:$0xff]
    %v681 = vld [vmem:[#allocation3 + $0x198] sm:$0xff]
    %v682 = vld [vmem:[#allocation3 + $0x1a0] sm:$0xff]
    %v683 = vld [vmem:[#allocation3 + $0x1a8] sm:$0xff]
    %v684 = vld [vmem:[#allocation3 + $0x1b0] sm:$0xff]
    %v685 = vld [vmem:[#allocation3 + $0x1b8] sm:$0xff]
    %v686 = vld [vmem:[#allocation3 + $0x1c0] sm:$0xff]
    %v687 = vld [vmem:[#allocation3 + $0x1c8] sm:$0xff]
    %v688 = vld [vmem:[#allocation3 + $0x1d0] sm:$0xff]
    %v689 = vld [vmem:[#allocation3 + $0x1d8] sm:$0xff]
    %v690 = vld [vmem:[#allocation3 + $0x1e0] sm:$0xff]
    %v691 = vld [vmem:[#allocation3 + $0x1e8] sm:$0xff]
    %v692 = vld [vmem:[#allocation3 + $0x1f0] sm:$0xff]
    %v693 = vld [vmem:[#allocation3 + $0x1f8] sm:$0xff]
    %v694 = vld [vmem:[#allocation2] sm:$0xfe]
    %v695 = vld [vmem:[#allocation2 + $0x8] sm:$0xfe]
    %v696 = vld [vmem:[#allocation2 + $0x10] sm:$0x1]
    %v697 = vld [vmem:[#allocation2 + $0x18] sm:$0x1]
    %v698 = vld [vmem:[#allocation2 + $0x20] sm:$0xfe]
    %v699 = vld [vmem:[#allocation2 + $0x28] sm:$0xfe]
    %v700 = vld [vmem:[#allocation2 + $0x30] sm:$0x1]
    %v701 = vld [vmem:[#allocation2 + $0x38] sm:$0x1]
    %v710 = vrot.slane %v694, 1
    %v711 = vrot.slane %v696, 1
    %v712 = vsel %vm166, %v710, %v711
    %v713 = vrot.slane %v695, 1
    %v714 = vrot.slane %v697, 1
    %v715 = vsel %vm166, %v713, %v714
    %v716 = vrot.slane %v698, 1
    %v717 = vrot.slane %v700, 1
    %v718 = vsel %vm166, %v716, %v717
    %v719 = vrot.slane %v699, 1
    %v720 = vrot.slane %v701, 1
    %v721 = vsel %vm166, %v719, %v720
    %s726 = scalar_lea.vmem [#allocation3], 512
    %v727 = vld [vmem:[%s726] sm:$0xff]
    %v728 = vld [vmem:[%s726 + $0x8] sm:$0xff]
    %v729 = vld [vmem:[%s726 + $0x10] sm:$0xff]
    %v730 = vld [vmem:[%s726 + $0x18] sm:$0xff]
    %v731 = vld [vmem:[%s726 + $0x20] sm:$0xff]
    %v732 = vld [vmem:[%s726 + $0x28] sm:$0xff]
    %v733 = vld [vmem:[%s726 + $0x30] sm:$0xff]
    %v734 = vld [vmem:[%s726 + $0x38] sm:$0xff]
    %v735 = vld [vmem:[%s726 + $0x40] sm:$0xff]
    %v736 = vld [vmem:[%s726 + $0x48] sm:$0xff]
    %v737 = vld [vmem:[%s726 + $0x50] sm:$0xff]
    %v738 = vld [vmem:[%s726 + $0x58] sm:$0xff]
    %v739 = vld [vmem:[%s726 + $0x60] sm:$0xff]
    %v740 = vld [vmem:[%s726 + $0x68] sm:$0xff]
    %v741 = vld [vmem:[%s726 + $0x70] sm:$0xff]
    %v742 = vld [vmem:[%s726 + $0x78] sm:$0xff]
    %v743 = vld [vmem:[%s726 + $0x80] sm:$0xff]
    %v744 = vld [vmem:[%s726 + $0x88] sm:$0xff]
    %v745 = vld [vmem:[%s726 + $0x90] sm:$0xff]
    %v746 = vld [vmem:[%s726 + $0x98] sm:$0xff]
    %v747 = vld [vmem:[%s726 + $0xa0] sm:$0xff]
    %v748 = vld [vmem:[%s726 + $0xa8] sm:$0xff]
    %v749 = vld [vmem:[%s726 + $0xb0] sm:$0xff]
    %v750 = vld [vmem:[%s726 + $0xb8] sm:$0xff]
    %v751 = vld [vmem:[%s726 + $0xc0] sm:$0xff]
    %v752 = vld [vmem:[%s726 + $0xc8] sm:$0xff]
    %v753 = vld [vmem:[%s726 + $0xd0] sm:$0xff]
    %v754 = vld [vmem:[%s726 + $0xd8] sm:$0xff]
    %v755 = vld [vmem:[%s726 + $0xe0] sm:$0xff]
    %v756 = vld [vmem:[%s726 + $0xe8] sm:$0xff]
    %v757 = vld [vmem:[%s726 + $0xf0] sm:$0xff]
    %v758 = vld [vmem:[%s726 + $0xf8] sm:$0xff]
    %v759 = vld [vmem:[%s726 + $0x100] sm:$0xff]
    %v760 = vld [vmem:[%s726 + $0x108] sm:$0xff]
    %v761 = vld [vmem:[%s726 + $0x110] sm:$0xff]
    %v762 = vld [vmem:[%s726 + $0x118] sm:$0xff]
    %v763 = vld [vmem:[%s726 + $0x120] sm:$0xff]
    %v764 = vld [vmem:[%s726 + $0x128] sm:$0xff]
    %v765 = vld [vmem:[%s726 + $0x130] sm:$0xff]
    %v766 = vld [vmem:[%s726 + $0x138] sm:$0xff]
    %v767 = vld [vmem:[%s726 + $0x140] sm:$0xff]
    %v768 = vld [vmem:[%s726 + $0x148] sm:$0xff]
    %v769 = vld [vmem:[%s726 + $0x150] sm:$0xff]
    %v770 = vld [vmem:[%s726 + $0x158] sm:$0xff]
    %v771 = vld [vmem:[%s726 + $0x160] sm:$0xff]
    %v772 = vld [vmem:[%s726 + $0x168] sm:$0xff]
    %v773 = vld [vmem:[%s726 + $0x170] sm:$0xff]
    %v774 = vld [vmem:[%s726 + $0x178] sm:$0xff]
    %v775 = vld [vmem:[%s726 + $0x180] sm:$0xff]
    %v776 = vld [vmem:[%s726 + $0x188] sm:$0xff]
    %v777 = vld [vmem:[%s726 + $0x190] sm:$0xff]
    %v778 = vld [vmem:[%s726 + $0x198] sm:$0xff]
    %v779 = vld [vmem:[%s726 + $0x1a0] sm:$0xff]
    %v780 = vld [vmem:[%s726 + $0x1a8] sm:$0xff]
    %v781 = vld [vmem:[%s726 + $0x1b0] sm:$0xff]
    %v782 = vld [vmem:[%s726 + $0x1b8] sm:$0xff]
    %v783 = vld [vmem:[%s726 + $0x1c0] sm:$0xff]
    %v784 = vld [vmem:[%s726 + $0x1c8] sm:$0xff]
    %v785 = vld [vmem:[%s726 + $0x1d0] sm:$0xff]
    %v786 = vld [vmem:[%s726 + $0x1d8] sm:$0xff]
    %v787 = vld [vmem:[%s726 + $0x1e0] sm:$0xff]
    %v788 = vld [vmem:[%s726 + $0x1e8] sm:$0xff]
    %v789 = vld [vmem:[%s726 + $0x1f0] sm:$0xff]
    %v790 = vld [vmem:[%s726 + $0x1f8] sm:$0xff]
    %791 = vmatprep.subr.mxu0 %v728
    %792 = vmatpush1.msra.mxu0 %v727
    %793 = vmatprep.subr.mxu0 %v730
    %794 = vmatpush1.msra.mxu0 %v729
    %795 = vmatprep.subr.mxu0 %v732
    %796 = vmatpush1.msra.mxu0 %v731
    %797 = vmatprep.subr.mxu0 %v734
    %798 = vmatpush1.msra.mxu0 %v733
    %799 = vmatprep.subr.mxu0 %v736
    %800 = vmatpush1.msra.mxu0 %v735
    %801 = vmatprep.subr.mxu0 %v738
    %802 = vmatpush1.msra.mxu0 %v737
    %803 = vmatprep.subr.mxu0 %v740
    %804 = vmatpush1.msra.mxu0 %v739
    %805 = vmatprep.subr.mxu0 %v742
    %806 = vmatpush1.msra.mxu0 %v741
    %807 = vmatprep.subr.mxu0 %v744
    %808 = vmatpush1.msra.mxu0 %v743
    %809 = vmatprep.subr.mxu0 %v746
    %810 = vmatpush1.msra.mxu0 %v745
    %811 = vmatprep.subr.mxu0 %v748
    %812 = vmatpush1.msra.mxu0 %v747
    %813 = vmatprep.subr.mxu0 %v750
    %814 = vmatpush1.msra.mxu0 %v749
    %815 = vmatprep.subr.mxu0 %v752
    %816 = vmatpush1.msra.mxu0 %v751
    %817 = vmatprep.subr.mxu0 %v754
    %818 = vmatpush1.msra.mxu0 %v753
    %819 = vmatprep.subr.mxu0 %v756
    %820 = vmatpush1.msra.mxu0 %v755
    %821 = vmatprep.subr.mxu0 %v758
    %822 = vmatpush1.msra.mxu0 %v757
    %823 = vmatprep.subr.mxu0 %v760
    %824 = vmatpush1.msra.mxu0 %v759
    %825 = vmatprep.subr.mxu0 %v762
    %826 = vmatpush1.msra.mxu0 %v761
    %827 = vmatprep.subr.mxu0 %v764
    %828 = vmatpush1.msra.mxu0 %v763
    %829 = vmatprep.subr.mxu0 %v766
    %830 = vmatpush1.msra.mxu0 %v765
    %831 = vmatprep.subr.mxu0 %v768
    %832 = vmatpush1.msra.mxu0 %v767
    %833 = vmatprep.subr.mxu0 %v770
    %834 = vmatpush1.msra.mxu0 %v769
    %835 = vmatprep.subr.mxu0 %v772
    %836 = vmatpush1.msra.mxu0 %v771
    %837 = vmatprep.subr.mxu0 %v774
    %838 = vmatpush1.msra.mxu0 %v773
    %839 = vmatprep.subr.mxu0 %v776
    %840 = vmatpush1.msra.mxu0 %v775
    %841 = vmatprep.subr.mxu0 %v778
    %842 = vmatpush1.msra.mxu0 %v777
    %843 = vmatprep.subr.mxu0 %v780
    %844 = vmatpush1.msra.mxu0 %v779
    %845 = vmatprep.subr.mxu0 %v782
    %846 = vmatpush1.msra.mxu0 %v781
    %847 = vmatprep.subr.mxu0 %v784
    %848 = vmatpush1.msra.mxu0 %v783
    %849 = vmatprep.subr.mxu0 %v786
    %850 = vmatpush1.msra.mxu0 %v785
    %851 = vmatprep.subr.mxu0 %v788
    %852 = vmatpush1.msra.mxu0 %v787
    %853 = vmatprep.subr.mxu0 %v790
    %854 = vmatpush1.msra.mxu0 %v789
    %855 = vmatprep.mubr.f32.mxu0 %v715
    %856 = vmatmul.mubr.f32.gmra.mrb[0].mxu0 %v712
    %v857 = vpop.f32.mrb[0].mxu0
    %v858 = vadd.f32 0.0, %v857
    %v859 = vpop.f32.mrb[0].mxu0
    %v860 = vadd.f32 0.0, %v859
    %861 = vmatprep.mubr.f32.mxu0 %v721
    %862 = vmatmul.mubr.f32.gmra.mrb[0].mxu0 %v718
    %v863 = vpop.f32.mrb[0].mxu0
    %v864 = vadd.f32 0.0, %v863
    %v865 = vpop.f32.mrb[0].mxu0
    %v866 = vadd.f32 0.0, %v865
    %867 = vdwg.mxu0
    %868 = vmatprep.subr.mxu0 %v631
    %869 = vmatpush1.msra.mxu0 %v630
    %870 = vmatprep.subr.mxu0 %v633
    %871 = vmatpush1.msra.mxu0 %v632
    %872 = vmatprep.subr.mxu0 %v635
    %873 = vmatpush1.msra.mxu0 %v634
    %874 = vmatprep.subr.mxu0 %v637
    %875 = vmatpush1.msra.mxu0 %v636
    %876 = vmatprep.subr.mxu0 %v639
    %877 = vmatpush1.msra.mxu0 %v638
    %878 = vmatprep.subr.mxu0 %v641
    %879 = vmatpush1.msra.mxu0 %v640
    %880 = vmatprep.subr.mxu0 %v643
    %881 = vmatpush1.msra.mxu0 %v642
    %882 = vmatprep.subr.mxu0 %v645
    %883 = vmatpush1.msra.mxu0 %v644
    %884 = vmatprep.subr.mxu0 %v647
    %885 = vmatpush1.msra.mxu0 %v646
    %886 = vmatprep.subr.mxu0 %v649
    %887 = vmatpush1.msra.mxu0 %v648
    %888 = vmatprep.subr.mxu0 %v651
    %889 = vmatpush1.msra.mxu0 %v650
    %890 = vmatprep.subr.mxu0 %v653
    %891 = vmatpush1.msra.mxu0 %v652
    %892 = vmatprep.subr.mxu0 %v655
    %893 = vmatpush1.msra.mxu0 %v654
    %894 = vmatprep.subr.mxu0 %v657
    %895 = vmatpush1.msra.mxu0 %v656
    %896 = vmatprep.subr.mxu0 %v659
    %897 = vmatpush1.msra.mxu0 %v658
    %898 = vmatprep.subr.mxu0 %v661
    %899 = vmatpush1.msra.mxu0 %v660
    %900 = vmatprep.subr.mxu0 %v663
    %901 = vmatpush1.msra.mxu0 %v662
    %902 = vmatprep.subr.mxu0 %v665
    %903 = vmatpush1.msra.mxu0 %v664
    %904 = vmatprep.subr.mxu0 %v667
    %905 = vmatpush1.msra.mxu0 %v666
    %906 = vmatprep.subr.mxu0 %v669
    %907 = vmatpush1.msra.mxu0 %v668
    %908 = vmatprep.subr.mxu0 %v671
    %909 = vmatpush1.msra.mxu0 %v670
    %910 = vmatprep.subr.mxu0 %v673
    %911 = vmatpush1.msra.mxu0 %v672
    %912 = vmatprep.subr.mxu0 %v675
    %913 = vmatpush1.msra.mxu0 %v674
    %914 = vmatprep.subr.mxu0 %v677
    %915 = vmatpush1.msra.mxu0 %v676
    %916 = vmatprep.subr.mxu0 %v679
    %917 = vmatpush1.msra.mxu0 %v678
    %918 = vmatprep.subr.mxu0 %v681
    %919 = vmatpush1.msra.mxu0 %v680
    %920 = vmatprep.subr.mxu0 %v683
    %921 = vmatpush1.msra.mxu0 %v682
    %922 = vmatprep.subr.mxu0 %v685
    %923 = vmatpush1.msra.mxu0 %v684
    %924 = vmatprep.subr.mxu0 %v687
    %925 = vmatpush1.msra.mxu0 %v686
    %926 = vmatprep.subr.mxu0 %v689
    %927 = vmatpush1.msra.mxu0 %v688
    %928 = vmatprep.subr.mxu0 %v691
    %929 = vmatpush1.msra.mxu0 %v690
    %930 = vmatprep.subr.mxu0 %v693
    %931 = vmatpush1.msra.mxu0 %v692
    %932 = vmatprep.mubr.f32.mxu0 %v627
    %933 = vmatmul.mubr.f32.gmra.mrb[0].mxu0 %v626
    %v934 = vpop.f32.mrb[0].mxu0
    %v935 = vadd.f32 %v858, %v934
    %v936 = vpop.f32.mrb[0].mxu0
    %v937 = vadd.f32 %v860, %v936
    %938 = vmatprep.mubr.f32.mxu0 %v629
    %939 = vmatmul.mubr.f32.gmra.mrb[0].mxu0 %v628
    %v940 = vpop.f32.mrb[0].mxu0
    %v941 = vadd.f32 %v864, %v940
    %v942 = vpop.f32.mrb[0].mxu0
    %v943 = vadd.f32 %v866, %v942
    %944 = vdwg.mxu0
    %v945 = vld [vmem:[#allocation2] sm:$0xfc]
    %v946 = vld [vmem:[#allocation2 + $0x8] sm:$0xfc]
    %v947 = vld [vmem:[#allocation2 + $0x10] sm:$0x3]
    %v948 = vld [vmem:[#allocation2 + $0x18] sm:$0x3]
    %v949 = vld [vmem:[#allocation2 + $0x20] sm:$0xfc]
    %v950 = vld [vmem:[#allocation2 + $0x28] sm:$0xfc]
    %v951 = vld [vmem:[#allocation2 + $0x30] sm:$0x3]
    %v952 = vld [vmem:[#allocation2 + $0x38] sm:$0x3]
    %v961 = vrot.slane %v945, 2
    %v962 = vrot.slane %v947, 2
    %v963 = vsel %vm418, %v961, %v962
    %v964 = vrot.slane %v946, 2
    %v965 = vrot.slane %v948, 2
    %v966 = vsel %vm418, %v964, %v965
    %v967 = vrot.slane %v949, 2
    %v968 = vrot.slane %v951, 2
    %v969 = vsel %vm418, %v967, %v968
    %v970 = vrot.slane %v950, 2
    %v971 = vrot.slane %v952, 2
    %v972 = vsel %vm418, %v970, %v971
    %s977 = scalar_lea.vmem [#allocation3], 1024
    %v978 = vld [vmem:[%s977] sm:$0xff]
    %v979 = vld [vmem:[%s977 + $0x8] sm:$0xff]
    %v980 = vld [vmem:[%s977 + $0x10] sm:$0xff]
    %v981 = vld [vmem:[%s977 + $0x18] sm:$0xff]
    %v982 = vld [vmem:[%s977 + $0x20] sm:$0xff]
    %v983 = vld [vmem:[%s977 + $0x28] sm:$0xff]
    %v984 = vld [vmem:[%s977 + $0x30] sm:$0xff]
    %v985 = vld [vmem:[%s977 + $0x38] sm:$0xff]
    %v986 = vld [vmem:[%s977 + $0x40] sm:$0xff]
    %v987 = vld [vmem:[%s977 + $0x48] sm:$0xff]
    %v988 = vld [vmem:[%s977 + $0x50] sm:$0xff]
    %v989 = vld [vmem:[%s977 + $0x58] sm:$0xff]
    %v990 = vld [vmem:[%s977 + $0x60] sm:$0xff]
    %v991 = vld [vmem:[%s977 + $0x68] sm:$0xff]
    %v992 = vld [vmem:[%s977 + $0x70] sm:$0xff]
    %v993 = vld [vmem:[%s977 + $0x78] sm:$0xff]
    %v994 = vld [vmem:[%s977 + $0x80] sm:$0xff]
    %v995 = vld [vmem:[%s977 + $0x88] sm:$0xff]
    %v996 = vld [vmem:[%s977 + $0x90] sm:$0xff]
    %v997 = vld [vmem:[%s977 + $0x98] sm:$0xff]
    %v998 = vld [vmem:[%s977 + $0xa0] sm:$0xff]
    %v999 = vld [vmem:[%s977 + $0xa8] sm:$0xff]
    %v1000 = vld [vmem:[%s977 + $0xb0] sm:$0xff]
    %v1001 = vld [vmem:[%s977 + $0xb8] sm:$0xff]
    %v1002 = vld [vmem:[%s977 + $0xc0] sm:$0xff]
    %v1003 = vld [vmem:[%s977 + $0xc8] sm:$0xff]
    %v1004 = vld [vmem:[%s977 + $0xd0] sm:$0xff]
    %v1005 = vld [vmem:[%s977 + $0xd8] sm:$0xff]
    %v1006 = vld [vmem:[%s977 + $0xe0] sm:$0xff]
    %v1007 = vld [vmem:[%s977 + $0xe8] sm:$0xff]
    %v1008 = vld [vmem:[%s977 + $0xf0] sm:$0xff]
    %v1009 = vld [vmem:[%s977 + $0xf8] sm:$0xff]
    %v1010 = vld [vmem:[%s977 + $0x100] sm:$0xff]
    %v1011 = vld [vmem:[%s977 + $0x108] sm:$0xff]
    %v1012 = vld [vmem:[%s977 + $0x110] sm:$0xff]
    %v1013 = vld [vmem:[%s977 + $0x118] sm:$0xff]
    %v1014 = vld [vmem:[%s977 + $0x120] sm:$0xff]
    %v1015 = vld [vmem:[%s977 + $0x128] sm:$0xff]
    %v1016 = vld [vmem:[%s977 + $0x130] sm:$0xff]
    %v1017 = vld [vmem:[%s977 + $0x138] sm:$0xff]
    %v1018 = vld [vmem:[%s977 + $0x140] sm:$0xff]
    %v1019 = vld [vmem:[%s977 + $0x148] sm:$0xff]
    %v1020 = vld [vmem:[%s977 + $0x150] sm:$0xff]
    %v1021 = vld [vmem:[%s977 + $0x158] sm:$0xff]
    %v1022 = vld [vmem:[%s977 + $0x160] sm:$0xff]
    %v1023 = vld [vmem:[%s977 + $0x168] sm:$0xff]
    %v1024 = vld [vmem:[%s977 + $0x170] sm:$0xff]
    %v1025 = vld [vmem:[%s977 + $0x178] sm:$0xff]
    %v1026 = vld [vmem:[%s977 + $0x180] sm:$0xff]
    %v1027 = vld [vmem:[%s977 + $0x188] sm:$0xff]
    %v1028 = vld [vmem:[%s977 + $0x190] sm:$0xff]
    %v1029 = vld [vmem:[%s977 + $0x198] sm:$0xff]
    %v1030 = vld [vmem:[%s977 + $0x1a0] sm:$0xff]
    %v1031 = vld [vmem:[%s977 + $0x1a8] sm:$0xff]
    %v1032 = vld [vmem:[%s977 + $0x1b0] sm:$0xff]
    %v1033 = vld [vmem:[%s977 + $0x1b8] sm:$0xff]
    %v1034 = vld [vmem:[%s977 + $0x1c0] sm:$0xff]
    %v1035 = vld [vmem:[%s977 + $0x1c8] sm:$0xff]
    %v1036 = vld [vmem:[%s977 + $0x1d0] sm:$0xff]
    %v1037 = vld [vmem:[%s977 + $0x1d8] sm:$0xff]
    %v1038 = vld [vmem:[%s977 + $0x1e0] sm:$0xff]
    %v1039 = vld [vmem:[%s977 + $0x1e8] sm:$0xff]
    %v1040 = vld [vmem:[%s977 + $0x1f0] sm:$0xff]
    %v1041 = vld [vmem:[%s977 + $0x1f8] sm:$0xff]
    %1042 = vmatprep.subr.mxu0 %v979
    %1043 = vmatpush1.msra.mxu0 %v978
    %1044 = vmatprep.subr.mxu0 %v981
    %1045 = vmatpush1.msra.mxu0 %v980
    %1046 = vmatprep.subr.mxu0 %v983
    %1047 = vmatpush1.msra.mxu0 %v982
    %1048 = vmatprep.subr.mxu0 %v985
    %1049 = vmatpush1.msra.mxu0 %v984
    %1050 = vmatprep.subr.mxu0 %v987
    %1051 = vmatpush1.msra.mxu0 %v986
    %1052 = vmatprep.subr.mxu0 %v989
    %1053 = vmatpush1.msra.mxu0 %v988
    %1054 = vmatprep.subr.mxu0 %v991
    %1055 = vmatpush1.msra.mxu0 %v990
    %1056 = vmatprep.subr.mxu0 %v993
    %1057 = vmatpush1.msra.mxu0 %v992
    %1058 = vmatprep.subr.mxu0 %v995
    %1059 = vmatpush1.msra.mxu0 %v994
    %1060 = vmatprep.subr.mxu0 %v997
    %1061 = vmatpush1.msra.mxu0 %v996
    %1062 = vmatprep.subr.mxu0 %v999
    %1063 = vmatpush1.msra.mxu0 %v998
    %1064 = vmatprep.subr.mxu0 %v1001
    %1065 = vmatpush1.msra.mxu0 %v1000
    %1066 = vmatprep.subr.mxu0 %v1003
    %1067 = vmatpush1.msra.mxu0 %v1002
    %1068 = vmatprep.subr.mxu0 %v1005
    %1069 = vmatpush1.msra.mxu0 %v1004
    %1070 = vmatprep.subr.mxu0 %v1007
    %1071 = vmatpush1.msra.mxu0 %v1006
    %1072 = vmatprep.subr.mxu0 %v1009
    %1073 = vmatpush1.msra.mxu0 %v1008
    %1074 = vmatprep.subr.mxu0 %v1011
    %1075 = vmatpush1.msra.mxu0 %v1010
    %1076 = vmatprep.subr.mxu0 %v1013
    %1077 = vmatpush1.msra.mxu0 %v1012
    %1078 = vmatprep.subr.mxu0 %v1015
    %1079 = vmatpush1.msra.mxu0 %v1014
    %1080 = vmatprep.subr.mxu0 %v1017
    %1081 = vmatpush1.msra.mxu0 %v1016
    %1082 = vmatprep.subr.mxu0 %v1019
    %1083 = vmatpush1.msra.mxu0 %v1018
    %1084 = vmatprep.subr.mxu0 %v1021
    %1085 = vmatpush1.msra.mxu0 %v1020
    %1086 = vmatprep.subr.mxu0 %v1023
    %1087 = vmatpush1.msra.mxu0 %v1022
    %1088 = vmatprep.subr.mxu0 %v1025
    %1089 = vmatpush1.msra.mxu0 %v1024
    %1090 = vmatprep.subr.mxu0 %v1027
    %1091 = vmatpush1.msra.mxu0 %v1026
    %1092 = vmatprep.subr.mxu0 %v1029
    %1093 = vmatpush1.msra.mxu0 %v1028
    %1094 = vmatprep.subr.mxu0 %v1031
    %1095 = vmatpush1.msra.mxu0 %v1030
    %1096 = vmatprep.subr.mxu0 %v1033
    %1097 = vmatpush1.msra.mxu0 %v1032
    %1098 = vmatprep.subr.mxu0 %v1035
    %1099 = vmatpush1.msra.mxu0 %v1034
    %1100 = vmatprep.subr.mxu0 %v1037
    %1101 = vmatpush1.msra.mxu0 %v1036
    %1102 = vmatprep.subr.mxu0 %v1039
    %1103 = vmatpush1.msra.mxu0 %v1038
    %1104 = vmatprep.subr.mxu0 %v1041
    %1105 = vmatpush1.msra.mxu0 %v1040
    %1106 = vmatprep.mubr.f32.mxu0 %v966
    %1107 = vmatmul.mubr.f32.gmra.mrb[0].mxu0 %v963
    %v1108 = vpop.f32.mrb[0].mxu0
    %v1109 = vadd.f32 0.0, %v1108
    %v1110 = vpop.f32.mrb[0].mxu0
    %v1111 = vadd.f32 0.0, %v1110
    %1112 = vmatprep.mubr.f32.mxu0 %v972
    %1113 = vmatmul.mubr.f32.gmra.mrb[0].mxu0 %v969
    %v1114 = vpop.f32.mrb[0].mxu0
    %v1115 = vadd.f32 0.0, %v1114
    %v1116 = vpop.f32.mrb[0].mxu0
    %v1117 = vadd.f32 0.0, %v1116
    %1118 = vdwg.mxu0
    %v1119 = vadd.f32 %v935, %v1109
    %v1120 = vadd.f32 %v937, %v1111
    %v1121 = vadd.f32 %v941, %v1115
    %v1122 = vadd.f32 %v943, %v1117
    %v1123 = vld [vmem:[%s4] sm:$0x3]
    %v1125 = vlaneseq
    %v1126 = vshrl.u32 %v1125, 7
    %v1127 = vsub.s32 0, %v1126
    %v1128 = vrot.slane %v1123, %v1127
    %v1129 = vlaneseq
    %v1130 = vshrl.u32 %v1129, 7
    %v1131 = vsub.s32 1, %v1130
    %v1132 = vrot.slane %v1123, %v1131
    %v1135 = vadd.f32 %v1119, %v1128
    %v1136 = vadd.f32 %v1120, %v1132
    %v1137 = vadd.f32 %v1121, %v1128
    %v1138 = vadd.f32 %v1122, %v1132
    %v1139 = vadd.f32 %v1135, %v58
    %v1140 = vadd.f32 %v1136, %v59
    %v1141 = vadd.f32 %v1137, %v60
    %v1142 = vadd.f32 %v1138, %v61
    %v1143 = vmax.f32 %v1139, 0.0
    %v1144 = vmax.f32 %v1140, 0.0
    %v1145 = vmax.f32 %v1141, 0.0
    %v1146 = vmax.f32 %v1142, 0.0
    %1147 = vst [vmem:[%s5] sm:$0xff] %v1143
    %1148 = vst [vmem:[%s5 + $0x8] sm:$0xff] %v1144
    %1149 = vst [vmem:[%s5 + $0x10] sm:$0xff] %v1145
    %1150 = vst [vmem:[%s5 + $0x18] sm:$0xff] %v1146
    // Predicated region
    $region26: #{resblock_pallas.1} parent=1 // pred_check
      _
    $region27: #{resblock_pallas.1} parent=1 // pred_check_branch
      %1152 = sbr.rel (0) target = $region29
    $region28: #{resblock_pallas.1} parent=1 // pred_region
      _
    $region29: #{resblock_pallas.1} parent=1 // pred_fallthru
      _
    // Predicated region
    $region30: #{resblock_pallas.1} parent=1 // pred_check
      _
    $region31: #{resblock_pallas.1} parent=1 // pred_check_branch
      %1154 = sbr.rel (0) target = $region33
    $region32: #{resblock_pallas.1} parent=1 // pred_region
      _
    $region33: #{resblock_pallas.1} parent=1 // pred_fallthru
      _
    %1155 = vsyncpa [#allocation6], 1
  %1156 = vsyncmov [#allocation4]
  %s1157 = vpop.sfrf %1156
  %p1158 = scmp.eq.s32.totalorder %s1157, 0
  %p1159 = pneg %p1158
  %1161 = shalt.err (%p1159)

</llo_original>
